<compile_context>
chip_gen: v7x
topology: tpu7x:2x2x1
jax: 0.10.0
libtpu: 0.0.40
codegen_flags: <defaults>
</compile_context>

<pallas_src>
import numpy as np
import jax
import jax.numpy as jnp
from jax import lax
from jax.experimental import pallas as pl
from jax.experimental.pallas import tpu as pltpu

EPS = 1e-5

_VMEM_SPEC = pl.BlockSpec(memory_space=pltpu.MemorySpace.VMEM)


# ------------------------------ fused kernel --------------------------------

def _center2d_fused_kernel(x_ref, w1_ref, b1_ref, g1_ref, be1_ref,
                           w2_ref, b2_ref, g2_ref, be2_ref,
                           wd_ref, bd_ref, o_ref,
                           pad1_ref, pad2_ref):
    # x_ref : (4, N, Hp, Wp, Cin) f32  -- the 4 max-pool window slabs
    # wK_ref: (9*Cin_k, Cout_k)   bf16 -- 3x3 taps folded into contraction dim
    # bK/gK/beK_ref: (1, Cout_k)  f32
    # wd_ref: (Cout2, 4*Cd)       bf16 -- 2x2 deconv taps folded into out dim
    # bd_ref: (1, 4*Cd)           f32
    # o_ref : (N*Hp, Wp*4*Cd)     f32  -- lane-dense output (last dim = 128)
    # padK_ref: VMEM scratch (N, Hp+2, Wp+2, C_k) f32 for in-kernel zero pad
    _, n, hp, wp, cin = x_ref.shape
    mid_c = w1_ref.shape[-1]
    cd4 = wd_ref.shape[-1]

    # --- MaxPool2d(kernel_size=2): elementwise max of 4 window slabs (VPU) ---
    pooled = jnp.maximum(jnp.maximum(x_ref[0], x_ref[1]),
                         jnp.maximum(x_ref[2], x_ref[3]))      # (n,hp,wp,cin)

    def conv3x3_bn_relu(x_nhwc, pad_ref, w9_ref, b_ref, g_ref, be_ref):
        nb, hh, ww, ci = x_nhwc.shape
        # padding=1 done in VMEM: zero the scratch, write the interior
        pad_ref[...] = jnp.zeros(pad_ref.shape, pad_ref.dtype)
        pad_ref[:, 1:hh + 1, 1:ww + 1, :] = x_nhwc
        # im2col: fold the 9 taps into the contraction dim -> one deep matmul
        cols = []
        for dy in range(3):
            for dx in range(3):
                cols.append(pad_ref[:, dy:dy + hh, dx:dx + ww, :]
                            .reshape(nb * hh * ww, ci))
        patches = jnp.concatenate(cols, axis=-1).astype(jnp.bfloat16)
        acc = jnp.dot(patches, w9_ref[...],
                      preferred_element_type=jnp.float32) + b_ref[...]
        # BatchNorm2d (training-mode biased stats over N,H,W) + ReLU, f32 math
        mean = jnp.mean(acc, axis=0, keepdims=True)
        var = jnp.mean((acc - mean) ** 2, axis=0, keepdims=True)
        y = (acc - mean) * lax.rsqrt(var + EPS) * g_ref[...] + be_ref[...]
        return jnp.maximum(y, 0.0)                             # (R, co) f32

    y1 = conv3x3_bn_relu(pooled, pad1_ref, w1_ref, b1_ref, g1_ref, be1_ref)
    y1 = y1.reshape(n, hp, wp, mid_c)
    y2 = conv3x3_bn_relu(y1, pad2_ref, w2_ref, b2_ref, g2_ref, be2_ref)

    # --- ConvTranspose2d(k=2, s=2): single wide MXU matmul (C -> 4*Cd) ---
    yd = jnp.dot(y2.astype(jnp.bfloat16), wd_ref[...],
                 preferred_element_type=jnp.float32) + bd_ref[...]  # (n*hp*wp, 4cd)

    # lane-dense store: fold W and the 4 deconv taps into the lane axis
    yd3 = yd.reshape(n * hp, wp, cd4)
    o_ref[...] = jnp.concatenate([yd3[:, j, :] for j in range(wp)], axis=-1)


# -------------------------------- wrapper ------------------------------------

def center2d_forward(x_nchw, params):
    (w1, b1, g1, be1, w2, b2, g2, be2, wd, bd) = params
    n, cin, h, w = x_nchw.shape
    hp, wp = h // 2, w // 2
    mid_c = w1.shape[-1]
    out_c = w2.shape[-1]
    dec_c = wd.shape[-1]

    # one-off glue: NCHW -> 4 NHWC pooling-window slabs (fused by XLA with the
    # layout transpose we need anyway); kernel then only does VPU max.
    xs = x_nchw.reshape(n, cin, hp, 2, wp, 2)
    xs = jnp.transpose(xs, (3, 5, 0, 2, 4, 1)).reshape(4, n, hp, wp, cin)

    # fold 3x3 taps / 2x2 deconv taps into matmul dims; bf16 for the MXU
    w1f = w1.reshape(9 * cin, mid_c).astype(jnp.bfloat16)
    w2f = w2.reshape(9 * mid_c, out_c).astype(jnp.bfloat16)
    wdf = jnp.transpose(wd, (1, 0, 2)).reshape(out_c, 4 * dec_c).astype(jnp.bfloat16)
    bdf = jnp.tile(bd, 4).reshape(1, 4 * dec_c)

    y = pl.pallas_call(
        _center2d_fused_kernel,
        out_shape=jax.ShapeDtypeStruct((n * hp, wp * 4 * dec_c), jnp.float32),
        in_specs=[_VMEM_SPEC] * 11,
        out_specs=_VMEM_SPEC,
        scratch_shapes=[
            pltpu.VMEM((n, hp + 2, wp + 2, cin), jnp.float32),    # pad for conv1
            pltpu.VMEM((n, hp + 2, wp + 2, mid_c), jnp.float32),  # pad for conv2
        ],
    )(xs, w1f, b1.reshape(1, -1), g1.reshape(1, -1), be1.reshape(1, -1),
      w2f, b2.reshape(1, -1), g2.reshape(1, -1), be2.reshape(1, -1),
      wdf, bdf)

    # pixel-shuffle back to NCHW: column = j*(4*Cd) + (2*dy+dx)*Cd + d
    y = y.reshape(n, hp, wp, 2, 2, dec_c)           # (n, i, j, dy, dx, d)
    y = jnp.transpose(y, (0, 5, 1, 3, 2, 4))        # (n, d, i, dy, j, dx)
    return y.reshape(n, dec_c, h, w)


# --------------------------- reference (plain JAX) ---------------------------

def center2d_reference(x_nchw, params):
    (w1, b1, g1, be1, w2, b2, g2, be2, wd, bd) = params
    n, c, h, w = x_nchw.shape
    x = x_nchw.reshape(n, c, h // 2, 2, w // 2, 2).max(axis=(3, 5))

    def conv_bn_relu(y, wk, bk, gk, bek):
        w_oihw = jnp.transpose(wk, (3, 2, 0, 1))
        z = lax.conv_general_dilated(y, w_oihw, (1, 1), ((1, 1), (1, 1)),
                                     dimension_numbers=('NCHW', 'OIHW', 'NCHW'))
        z = z + bk[None, :, None, None]
        mean = z.mean(axis=(0, 2, 3), keepdims=True)
        var = ((z - mean) ** 2).mean(axis=(0, 2, 3), keepdims=True)
        z = (z - mean) / jnp.sqrt(var + EPS) * gk[None, :, None, None] \
            + bek[None, :, None, None]
        return jnp.maximum(z, 0.0)

    x = conv_bn_relu(x, w1, b1, g1, be1)
    x = conv_bn_relu(x, w2, b2, g2, be2)

    # ConvTranspose2d k=2 s=2 via einsum + pixel shuffle (wd is (k=2*dy+dx, C, Cd))
    y = jnp.einsum('nchw,kcd->nkdhw', x, wd) + bd[None, None, :, None, None]
    n2, _, cd, hh, ww = y.shape
    y = y.reshape(n2, 2, 2, cd, hh, ww)
    y = jnp.transpose(y, (0, 3, 4, 1, 5, 2))        # n, cd, h, dy, w, dx
    return y.reshape(n2, cd, 2 * hh, 2 * ww)


# ------------------------------ params init ----------------------------------

def init_params(key, in_c, mid_c, out_c, dec_c):
    ks = jax.random.split(key, 10)
    w1 = 0.1 * jax.random.normal(ks[0], (3, 3, in_c, mid_c), jnp.float32)
    b1 = 0.1 * jax.random.normal(ks[1], (mid_c,), jnp.float32)
    g1 = 1.0 + 0.1 * jax.random.normal(ks[2], (mid_c,), jnp.float32)
    be1 = 0.1 * jax.random.normal(ks[3], (mid_c,), jnp.float32)
    w2 = 0.1 * jax.random.normal(ks[4], (3, 3, mid_c, out_c), jnp.float32)
    b2 = 0.1 * jax.random.normal(ks[5], (out_c,), jnp.float32)
    g2 = 1.0 + 0.1 * jax.random.normal(ks[6], (out_c,), jnp.float32)
    be2 = 0.1 * jax.random.normal(ks[7], (out_c,), jnp.float32)
    # ConvTranspose2d weight re-laid-out as (k=2*dy+dx, C_in, C_deconv)
    wd = 0.1 * jax.random.normal(ks[8], (4, out_c, dec_c), jnp.float32)
    bd = 0.1 * jax.random.normal(ks[9], (dec_c,), jnp.float32)
    return (w1, b1, g1, be1, w2, b2, g2, be2, wd, bd)


if __name__ == "__main__":
    key = jax.random.PRNGKey(0)
    kx, kp = jax.random.split(key)

    N, Cin, H, W = 2, 4, 16, 16
    mid_c, out_c, dec_c = 8, 8, 4        # Center2D(4, 8, 8, 4), dropout=False

    x = jax.random.normal(kx, (N, Cin, H, W), jnp.float32)
    params = init_params(kp, Cin, mid_c, out_c, dec_c)

    y = jax.jit(center2d_forward)(x, params)
    y = jax.block_until_ready(y)
    assert y.shape == (N, dec_c, H, W), y.shape

    y_ref = center2d_reference(x, params)
    # tolerance accounts for bf16 MXU operands in the kernel vs pure-f32 reference
    np.testing.assert_allclose(np.asarray(y), np.asarray(y_ref),
                               rtol=3e-2, atol=3e-2)
    print("KERNEL_OK")
</pallas_src>

<mosaic_0001>
module attributes {stable_mosaic.version = 11 : i64} {
  func.func @_center2d_fused_kernel(%arg0: memref<4x2x8x8x4xf32, #tpu.memory_space<vmem>>, %arg1: memref<36x8xbf16, #tpu.memory_space<vmem>>, %arg2: memref<1x8xf32, #tpu.memory_space<vmem>>, %arg3: memref<1x8xf32, #tpu.memory_space<vmem>>, %arg4: memref<1x8xf32, #tpu.memory_space<vmem>>, %arg5: memref<72x8xbf16, #tpu.memory_space<vmem>>, %arg6: memref<1x8xf32, #tpu.memory_space<vmem>>, %arg7: memref<1x8xf32, #tpu.memory_space<vmem>>, %arg8: memref<1x8xf32, #tpu.memory_space<vmem>>, %arg9: memref<8x16xbf16, #tpu.memory_space<vmem>>, %arg10: memref<1x16xf32, #tpu.memory_space<vmem>>, %arg11: memref<16x128xf32, #tpu.memory_space<vmem>>, %arg12: memref<2x10x10x4xf32, #tpu.memory_space<vmem>>, %arg13: memref<2x10x10x8xf32, #tpu.memory_space<vmem>>) attributes {dimension_semantics = [], scalar_prefetch = 0 : i64, scratch_operands = 2 : i64, tpu.core_type = #tpu.core_type<tc>} {
    %c0 = arith.constant 0 : index
    %c0_0 = arith.constant 0 : index
    %c0_1 = arith.constant 0 : index
    %c0_2 = arith.constant 0 : index
    %c0_3 = arith.constant 0 : index
    %0 = vector.load %arg0[%c0, %c0_0, %c0_1, %c0_2, %c0_3] : memref<4x2x8x8x4xf32, #tpu.memory_space<vmem>>, vector<1x2x8x8x4xf32>
    %1 = vector.shape_cast %0 : vector<1x2x8x8x4xf32> to vector<2x8x8x4xf32>
    %c1 = arith.constant 1 : index
    %c0_4 = arith.constant 0 : index
    %c0_5 = arith.constant 0 : index
    %c0_6 = arith.constant 0 : index
    %c0_7 = arith.constant 0 : index
    %2 = vector.load %arg0[%c1, %c0_4, %c0_5, %c0_6, %c0_7] : memref<4x2x8x8x4xf32, #tpu.memory_space<vmem>>, vector<1x2x8x8x4xf32>
    %3 = vector.shape_cast %2 : vector<1x2x8x8x4xf32> to vector<2x8x8x4xf32>
    %4 = arith.maximumf %1, %3 : vector<2x8x8x4xf32>
    %c2 = arith.constant 2 : index
    %c0_8 = arith.constant 0 : index
    %c0_9 = arith.constant 0 : index
    %c0_10 = arith.constant 0 : index
    %c0_11 = arith.constant 0 : index
    %5 = vector.load %arg0[%c2, %c0_8, %c0_9, %c0_10, %c0_11] : memref<4x2x8x8x4xf32, #tpu.memory_space<vmem>>, vector<1x2x8x8x4xf32>
    %6 = vector.shape_cast %5 : vector<1x2x8x8x4xf32> to vector<2x8x8x4xf32>
    %c3 = arith.constant 3 : index
    %c0_12 = arith.constant 0 : index
    %c0_13 = arith.constant 0 : index
    %c0_14 = arith.constant 0 : index
    %c0_15 = arith.constant 0 : index
    %7 = vector.load %arg0[%c3, %c0_12, %c0_13, %c0_14, %c0_15] : memref<4x2x8x8x4xf32, #tpu.memory_space<vmem>>, vector<1x2x8x8x4xf32>
    %8 = vector.shape_cast %7 : vector<1x2x8x8x4xf32> to vector<2x8x8x4xf32>
    %9 = arith.maximumf %6, %8 : vector<2x8x8x4xf32>
    %10 = arith.maximumf %4, %9 : vector<2x8x8x4xf32>
    %cst = arith.constant 0.000000e+00 : f32
    %11 = vector.broadcast %cst : f32 to vector<2x10x10x4xf32>
    %c0_16 = arith.constant 0 : index
    %c0_17 = arith.constant 0 : index
    %c0_18 = arith.constant 0 : index
    %c0_19 = arith.constant 0 : index
    %12 = vector.load %arg12[%c0_16, %c0_17, %c0_18, %c0_19] : memref<2x10x10x4xf32, #tpu.memory_space<vmem>>, vector<2x10x10x4xf32>
    tpu.vector_store %arg12[%c0_16, %c0_17, %c0_18, %c0_19], %11 {strides = array<i32>} : memref<2x10x10x4xf32, #tpu.memory_space<vmem>>, vector<2x10x10x4xf32>,
    %c0_20 = arith.constant 0 : index
    %c1_21 = arith.constant 1 : index
    %c1_22 = arith.constant 1 : index
    %c0_23 = arith.constant 0 : index
    %13 = vector.load %arg12[%c0_20, %c1_21, %c1_22, %c0_23] : memref<2x10x10x4xf32, #tpu.memory_space<vmem>>, vector<2x8x8x4xf32>
    tpu.vector_store %arg12[%c0_20, %c1_21, %c1_22, %c0_23], %10 {strides = array<i32>} : memref<2x10x10x4xf32, #tpu.memory_space<vmem>>, vector<2x8x8x4xf32>,
    %c0_24 = arith.constant 0 : index
    %c0_25 = arith.constant 0 : index
    %c0_26 = arith.constant 0 : index
    %c0_27 = arith.constant 0 : index
    %14 = vector.load %arg12[%c0_24, %c0_25, %c0_26, %c0_27] : memref<2x10x10x4xf32, #tpu.memory_space<vmem>>, vector<2x8x8x4xf32>
    %15 = vector.shape_cast %14 : vector<2x8x8x4xf32> to vector<128x4xf32>
    %c0_28 = arith.constant 0 : index
    %c0_29 = arith.constant 0 : index
    %c1_30 = arith.constant 1 : index
    %c0_31 = arith.constant 0 : index
    %16 = vector.load %arg12[%c0_28, %c0_29, %c1_30, %c0_31] : memref<2x10x10x4xf32, #tpu.memory_space<vmem>>, vector<2x8x8x4xf32>
    %17 = vector.shape_cast %16 : vector<2x8x8x4xf32> to vector<128x4xf32>
    %c0_32 = arith.constant 0 : index
    %c0_33 = arith.constant 0 : index
    %c2_34 = arith.constant 2 : index
    %c0_35 = arith.constant 0 : index
    %18 = vector.load %arg12[%c0_32, %c0_33, %c2_34, %c0_35] : memref<2x10x10x4xf32, #tpu.memory_space<vmem>>, vector<2x8x8x4xf32>
    %19 = vector.shape_cast %18 : vector<2x8x8x4xf32> to vector<128x4xf32>
    %c0_36 = arith.constant 0 : index
    %c1_37 = arith.constant 1 : index
    %c0_38 = arith.constant 0 : index
    %c0_39 = arith.constant 0 : index
    %20 = vector.load %arg12[%c0_36, %c1_37, %c0_38, %c0_39] : memref<2x10x10x4xf32, #tpu.memory_space<vmem>>, vector<2x8x8x4xf32>
    %21 = vector.shape_cast %20 : vector<2x8x8x4xf32> to vector<128x4xf32>
    %c0_40 = arith.constant 0 : index
    %c1_41 = arith.constant 1 : index
    %c1_42 = arith.constant 1 : index
    %c0_43 = arith.constant 0 : index
    %22 = vector.load %arg12[%c0_40, %c1_41, %c1_42, %c0_43] : memref<2x10x10x4xf32, #tpu.memory_space<vmem>>, vector<2x8x8x4xf32>
    %23 = vector.shape_cast %22 : vector<2x8x8x4xf32> to vector<128x4xf32>
    %c0_44 = arith.constant 0 : index
    %c1_45 = arith.constant 1 : index
    %c2_46 = arith.constant 2 : index
    %c0_47 = arith.constant 0 : index
    %24 = vector.load %arg12[%c0_44, %c1_45, %c2_46, %c0_47] : memref<2x10x10x4xf32, #tpu.memory_space<vmem>>, vector<2x8x8x4xf32>
    %25 = vector.shape_cast %24 : vector<2x8x8x4xf32> to vector<128x4xf32>
    %c0_48 = arith.constant 0 : index
    %c2_49 = arith.constant 2 : index
    %c0_50 = arith.constant 0 : index
    %c0_51 = arith.constant 0 : index
    %26 = vector.load %arg12[%c0_48, %c2_49, %c0_50, %c0_51] : memref<2x10x10x4xf32, #tpu.memory_space<vmem>>, vector<2x8x8x4xf32>
    %27 = vector.shape_cast %26 : vector<2x8x8x4xf32> to vector<128x4xf32>
    %c0_52 = arith.constant 0 : index
    %c2_53 = arith.constant 2 : index
    %c1_54 = arith.constant 1 : index
    %c0_55 = arith.constant 0 : index
    %28 = vector.load %arg12[%c0_52, %c2_53, %c1_54, %c0_55] : memref<2x10x10x4xf32, #tpu.memory_space<vmem>>, vector<2x8x8x4xf32>
    %29 = vector.shape_cast %28 : vector<2x8x8x4xf32> to vector<128x4xf32>
    %c0_56 = arith.constant 0 : index
    %c2_57 = arith.constant 2 : index
    %c2_58 = arith.constant 2 : index
    %c0_59 = arith.constant 0 : index
    %30 = vector.load %arg12[%c0_56, %c2_57, %c2_58, %c0_59] : memref<2x10x10x4xf32, #tpu.memory_space<vmem>>, vector<2x8x8x4xf32>
    %31 = vector.shape_cast %30 : vector<2x8x8x4xf32> to vector<128x4xf32>
    %32 = tpu.concatenate %15, %17, %19, %21, %23, %25, %27, %29, %31 in 1 : vector<128x4xf32>, vector<128x4xf32>, vector<128x4xf32>, vector<128x4xf32>, vector<128x4xf32>, vector<128x4xf32>, vector<128x4xf32>, vector<128x4xf32>, vector<128x4xf32> -> vector<128x36xf32>
    %33 = arith.truncf %32 : vector<128x36xf32> to vector<128x36xbf16>
    %c0_60 = arith.constant 0 : index
    %c0_61 = arith.constant 0 : index
    %34 = vector.load %arg1[%c0_60, %c0_61] : memref<36x8xbf16, #tpu.memory_space<vmem>>, vector<36x8xbf16>
    %cst_62 = arith.constant dense<0.000000e+00> : vector<128x8xf32>
    %35 = tpu.matmul %33, %34, %cst_62 {dimension_numbers = #tpu.dot_dimension_numbers<[1], [0], [0], [1], [0, 0, 1, 1], [], []>} : vector<128x36xbf16>, vector<36x8xbf16>, vector<128x8xf32> -> vector<128x8xf32>
    %c0_63 = arith.constant 0 : index
    %c0_64 = arith.constant 0 : index
    %36 = vector.load %arg2[%c0_63, %c0_64] : memref<1x8xf32, #tpu.memory_space<vmem>>, vector<1x8xf32>
    %37 = vector.broadcast %36 : vector<1x8xf32> to vector<128x8xf32>
    %38 = arith.addf %35, %37 : vector<128x8xf32>
    %cst_65 = arith.constant dense<0.000000e+00> : vector<8xf32>
    %39 = vector.multi_reduction <add>, %38, %cst_65 [0] : vector<128x8xf32> to vector<8xf32>
    %40 = vector.shape_cast %39 : vector<8xf32> to vector<1x8xf32>
    %cst_66 = arith.constant 1.280000e+02 : f32
    %41 = vector.broadcast %cst_66 : f32 to vector<1x8xf32>
    %42 = arith.divf %40, %41 : vector<1x8xf32>
    %43 = vector.broadcast %42 : vector<1x8xf32> to vector<128x8xf32>
    %44 = arith.subf %38, %43 : vector<128x8xf32>
    %45 = arith.mulf %44, %44 : vector<128x8xf32>
    %cst_67 = arith.constant dense<0.000000e+00> : vector<8xf32>
    %46 = vector.multi_reduction <add>, %45, %cst_67 [0] : vector<128x8xf32> to vector<8xf32>
    %47 = vector.shape_cast %46 : vector<8xf32> to vector<1x8xf32>
    %cst_68 = arith.constant 1.280000e+02 : f32
    %48 = vector.broadcast %cst_68 : f32 to vector<1x8xf32>
    %49 = arith.divf %47, %48 : vector<1x8xf32>
    %50 = vector.broadcast %42 : vector<1x8xf32> to vector<128x8xf32>
    %51 = arith.subf %38, %50 : vector<128x8xf32>
    %cst_69 = arith.constant 9.99999974E-6 : f32
    %52 = vector.broadcast %cst_69 : f32 to vector<1x8xf32>
    %53 = arith.addf %49, %52 : vector<1x8xf32>
    %54 = math.rsqrt %53 : vector<1x8xf32>
    %55 = vector.broadcast %54 : vector<1x8xf32> to vector<128x8xf32>
    %56 = arith.mulf %51, %55 : vector<128x8xf32>
    %c0_70 = arith.constant 0 : index
    %c0_71 = arith.constant 0 : index
    %57 = vector.load %arg3[%c0_70, %c0_71] : memref<1x8xf32, #tpu.memory_space<vmem>>, vector<1x8xf32>
    %58 = vector.broadcast %57 : vector<1x8xf32> to vector<128x8xf32>
    %59 = arith.mulf %56, %58 : vector<128x8xf32>
    %c0_72 = arith.constant 0 : index
    %c0_73 = arith.constant 0 : index
    %60 = vector.load %arg4[%c0_72, %c0_73] : memref<1x8xf32, #tpu.memory_space<vmem>>, vector<1x8xf32>
    %61 = vector.broadcast %60 : vector<1x8xf32> to vector<128x8xf32>
    %62 = arith.addf %59, %61 : vector<128x8xf32>
    %cst_74 = arith.constant 0.000000e+00 : f32
    %63 = vector.broadcast %cst_74 : f32 to vector<128x8xf32>
    %64 = arith.maximumf %62, %63 : vector<128x8xf32>
    %65 = vector.shape_cast %64 : vector<128x8xf32> to vector<2x8x8x8xf32>
    %cst_75 = arith.constant 0.000000e+00 : f32
    %66 = vector.broadcast %cst_75 : f32 to vector<2x10x10x8xf32>
    %c0_76 = arith.constant 0 : index
    %c0_77 = arith.constant 0 : index
    %c0_78 = arith.constant 0 : index
    %c0_79 = arith.constant 0 : index
    %67 = vector.load %arg13[%c0_76, %c0_77, %c0_78, %c0_79] : memref<2x10x10x8xf32, #tpu.memory_space<vmem>>, vector<2x10x10x8xf32>
    tpu.vector_store %arg13[%c0_76, %c0_77, %c0_78, %c0_79], %66 {strides = array<i32>} : memref<2x10x10x8xf32, #tpu.memory_space<vmem>>, vector<2x10x10x8xf32>,
    %c0_80 = arith.constant 0 : index
    %c1_81 = arith.constant 1 : index
    %c1_82 = arith.constant 1 : index
    %c0_83 = arith.constant 0 : index
    %68 = vector.load %arg13[%c0_80, %c1_81, %c1_82, %c0_83] : memref<2x10x10x8xf32, #tpu.memory_space<vmem>>, vector<2x8x8x8xf32>
    tpu.vector_store %arg13[%c0_80, %c1_81, %c1_82, %c0_83], %65 {strides = array<i32>} : memref<2x10x10x8xf32, #tpu.memory_space<vmem>>, vector<2x8x8x8xf32>,
    %c0_84 = arith.constant 0 : index
    %c0_85 = arith.constant 0 : index
    %c0_86 = arith.constant 0 : index
    %c0_87 = arith.constant 0 : index
    %69 = vector.load %arg13[%c0_84, %c0_85, %c0_86, %c0_87] : memref<2x10x10x8xf32, #tpu.memory_space<vmem>>, vector<2x8x8x8xf32>
    %70 = vector.shape_cast %69 : vector<2x8x8x8xf32> to vector<128x8xf32>
    %c0_88 = arith.constant 0 : index
    %c0_89 = arith.constant 0 : index
    %c1_90 = arith.constant 1 : index
    %c0_91 = arith.constant 0 : index
    %71 = vector.load %arg13[%c0_88, %c0_89, %c1_90, %c0_91] : memref<2x10x10x8xf32, #tpu.memory_space<vmem>>, vector<2x8x8x8xf32>
    %72 = vector.shape_cast %71 : vector<2x8x8x8xf32> to vector<128x8xf32>
    %c0_92 = arith.constant 0 : index
    %c0_93 = arith.constant 0 : index
    %c2_94 = arith.constant 2 : index
    %c0_95 = arith.constant 0 : index
    %73 = vector.load %arg13[%c0_92, %c0_93, %c2_94, %c0_95] : memref<2x10x10x8xf32, #tpu.memory_space<vmem>>, vector<2x8x8x8xf32>
    %74 = vector.shape_cast %73 : vector<2x8x8x8xf32> to vector<128x8xf32>
    %c0_96 = arith.constant 0 : index
    %c1_97 = arith.constant 1 : index
    %c0_98 = arith.constant 0 : index
    %c0_99 = arith.constant 0 : index
    %75 = vector.load %arg13[%c0_96, %c1_97, %c0_98, %c0_99] : memref<2x10x10x8xf32, #tpu.memory_space<vmem>>, vector<2x8x8x8xf32>
    %76 = vector.shape_cast %75 : vector<2x8x8x8xf32> to vector<128x8xf32>
    %c0_100 = arith.constant 0 : index
    %c1_101 = arith.constant 1 : index
    %c1_102 = arith.constant 1 : index
    %c0_103 = arith.constant 0 : index
    %77 = vector.load %arg13[%c0_100, %c1_101, %c1_102, %c0_103] : memref<2x10x10x8xf32, #tpu.memory_space<vmem>>, vector<2x8x8x8xf32>
    %78 = vector.shape_cast %77 : vector<2x8x8x8xf32> to vector<128x8xf32>
    %c0_104 = arith.constant 0 : index
    %c1_105 = arith.constant 1 : index
    %c2_106 = arith.constant 2 : index
    %c0_107 = arith.constant 0 : index
    %79 = vector.load %arg13[%c0_104, %c1_105, %c2_106, %c0_107] : memref<2x10x10x8xf32, #tpu.memory_space<vmem>>, vector<2x8x8x8xf32>
    %80 = vector.shape_cast %79 : vector<2x8x8x8xf32> to vector<128x8xf32>
    %c0_108 = arith.constant 0 : index
    %c2_109 = arith.constant 2 : index
    %c0_110 = arith.constant 0 : index
    %c0_111 = arith.constant 0 : index
    %81 = vector.load %arg13[%c0_108, %c2_109, %c0_110, %c0_111] : memref<2x10x10x8xf32, #tpu.memory_space<vmem>>, vector<2x8x8x8xf32>
    %82 = vector.shape_cast %81 : vector<2x8x8x8xf32> to vector<128x8xf32>
    %c0_112 = arith.constant 0 : index
    %c2_113 = arith.constant 2 : index
    %c1_114 = arith.constant 1 : index
    %c0_115 = arith.constant 0 : index
    %83 = vector.load %arg13[%c0_112, %c2_113, %c1_114, %c0_115] : memref<2x10x10x8xf32, #tpu.memory_space<vmem>>, vector<2x8x8x8xf32>
    %84 = vector.shape_cast %83 : vector<2x8x8x8xf32> to vector<128x8xf32>
    %c0_116 = arith.constant 0 : index
    %c2_117 = arith.constant 2 : index
    %c2_118 = arith.constant 2 : index
    %c0_119 = arith.constant 0 : index
    %85 = vector.load %arg13[%c0_116, %c2_117, %c2_118, %c0_119] : memref<2x10x10x8xf32, #tpu.memory_space<vmem>>, vector<2x8x8x8xf32>
    %86 = vector.shape_cast %85 : vector<2x8x8x8xf32> to vector<128x8xf32>
    %87 = tpu.concatenate %70, %72, %74, %76, %78, %80, %82, %84, %86 in 1 : vector<128x8xf32>, vector<128x8xf32>, vector<128x8xf32>, vector<128x8xf32>, vector<128x8xf32>, vector<128x8xf32>, vector<128x8xf32>, vector<128x8xf32>, vector<128x8xf32> -> vector<128x72xf32>
    %88 = arith.truncf %87 : vector<128x72xf32> to vector<128x72xbf16>
    %c0_120 = arith.constant 0 : index
    %c0_121 = arith.constant 0 : index
    %89 = vector.load %arg5[%c0_120, %c0_121] : memref<72x8xbf16, #tpu.memory_space<vmem>>, vector<72x8xbf16>
    %cst_122 = arith.constant dense<0.000000e+00> : vector<128x8xf32>
    %90 = tpu.matmul %88, %89, %cst_122 {dimension_numbers = #tpu.dot_dimension_numbers<[1], [0], [0], [1], [0, 0, 1, 1], [], []>} : vector<128x72xbf16>, vector<72x8xbf16>, vector<128x8xf32> -> vector<128x8xf32>
    %c0_123 = arith.constant 0 : index
    %c0_124 = arith.constant 0 : index
    %91 = vector.load %arg6[%c0_123, %c0_124] : memref<1x8xf32, #tpu.memory_space<vmem>>, vector<1x8xf32>
    %92 = vector.broadcast %91 : vector<1x8xf32> to vector<128x8xf32>
    %93 = arith.addf %90, %92 : vector<128x8xf32>
    %cst_125 = arith.constant dense<0.000000e+00> : vector<8xf32>
    %94 = vector.multi_reduction <add>, %93, %cst_125 [0] : vector<128x8xf32> to vector<8xf32>
    %95 = vector.shape_cast %94 : vector<8xf32> to vector<1x8xf32>
    %cst_126 = arith.constant 1.280000e+02 : f32
    %96 = vector.broadcast %cst_126 : f32 to vector<1x8xf32>
    %97 = arith.divf %95, %96 : vector<1x8xf32>
    %98 = vector.broadcast %97 : vector<1x8xf32> to vector<128x8xf32>
    %99 = arith.subf %93, %98 : vector<128x8xf32>
    %100 = arith.mulf %99, %99 : vector<128x8xf32>
    %cst_127 = arith.constant dense<0.000000e+00> : vector<8xf32>
    %101 = vector.multi_reduction <add>, %100, %cst_127 [0] : vector<128x8xf32> to vector<8xf32>
    %102 = vector.shape_cast %101 : vector<8xf32> to vector<1x8xf32>
    %cst_128 = arith.constant 1.280000e+02 : f32
    %103 = vector.broadcast %cst_128 : f32 to vector<1x8xf32>
    %104 = arith.divf %102, %103 : vector<1x8xf32>
    %105 = vector.broadcast %97 : vector<1x8xf32> to vector<128x8xf32>
    %106 = arith.subf %93, %105 : vector<128x8xf32>
    %cst_129 = arith.constant 9.99999974E-6 : f32
    %107 = vector.broadcast %cst_129 : f32 to vector<1x8xf32>
    %108 = arith.addf %104, %107 : vector<1x8xf32>
    %109 = math.rsqrt %108 : vector<1x8xf32>
    %110 = vector.broadcast %109 : vector<1x8xf32> to vector<128x8xf32>
    %111 = arith.mulf %106, %110 : vector<128x8xf32>
    %c0_130 = arith.constant 0 : index
    %c0_131 = arith.constant 0 : index
    %112 = vector.load %arg7[%c0_130, %c0_131] : memref<1x8xf32, #tpu.memory_space<vmem>>, vector<1x8xf32>
    %113 = vector.broadcast %112 : vector<1x8xf32> to vector<128x8xf32>
    %114 = arith.mulf %111, %113 : vector<128x8xf32>
    %c0_132 = arith.constant 0 : index
    %c0_133 = arith.constant 0 : index
    %115 = vector.load %arg8[%c0_132, %c0_133] : memref<1x8xf32, #tpu.memory_space<vmem>>, vector<1x8xf32>
    %116 = vector.broadcast %115 : vector<1x8xf32> to vector<128x8xf32>
    %117 = arith.addf %114, %116 : vector<128x8xf32>
    %cst_134 = arith.constant 0.000000e+00 : f32
    %118 = vector.broadcast %cst_134 : f32 to vector<128x8xf32>
    %119 = arith.maximumf %117, %118 : vector<128x8xf32>
    %120 = arith.truncf %119 : vector<128x8xf32> to vector<128x8xbf16>
    %c0_135 = arith.constant 0 : index
    %c0_136 = arith.constant 0 : index
    %121 = vector.load %arg9[%c0_135, %c0_136] : memref<8x16xbf16, #tpu.memory_space<vmem>>, vector<8x16xbf16>
    %cst_137 = arith.constant dense<0.000000e+00> : vector<128x16xf32>
    %122 = tpu.matmul %120, %121, %cst_137 {dimension_numbers = #tpu.dot_dimension_numbers<[1], [0], [0], [1], [0, 0, 1, 1], [], []>} : vector<128x8xbf16>, vector<8x16xbf16>, vector<128x16xf32> -> vector<128x16xf32>
    %c0_138 = arith.constant 0 : index
    %c0_139 = arith.constant 0 : index
    %123 = vector.load %arg10[%c0_138, %c0_139] : memref<1x16xf32, #tpu.memory_space<vmem>>, vector<1x16xf32>
    %124 = vector.broadcast %123 : vector<1x16xf32> to vector<128x16xf32>
    %125 = arith.addf %122, %124 : vector<128x16xf32>
    %126 = vector.shape_cast %125 : vector<128x16xf32> to vector<16x8x16xf32>
    %127 = vector.extract_strided_slice %126 {offsets = [0, 0, 0], sizes = [16, 1, 16], strides = [1, 1, 1]} : vector<16x8x16xf32> to vector<16x1x16xf32>
    %128 = vector.shape_cast %127 : vector<16x1x16xf32> to vector<16x16xf32>
    %129 = vector.extract_strided_slice %126 {offsets = [0, 1, 0], sizes = [16, 1, 16], strides = [1, 1, 1]} : vector<16x8x16xf32> to vector<16x1x16xf32>
    %130 = vector.shape_cast %129 : vector<16x1x16xf32> to vector<16x16xf32>
    %131 = vector.extract_strided_slice %126 {offsets = [0, 2, 0], sizes = [16, 1, 16], strides = [1, 1, 1]} : vector<16x8x16xf32> to vector<16x1x16xf32>
    %132 = vector.shape_cast %131 : vector<16x1x16xf32> to vector<16x16xf32>
    %133 = vector.extract_strided_slice %126 {offsets = [0, 3, 0], sizes = [16, 1, 16], strides = [1, 1, 1]} : vector<16x8x16xf32> to vector<16x1x16xf32>
    %134 = vector.shape_cast %133 : vector<16x1x16xf32> to vector<16x16xf32>
    %135 = vector.extract_strided_slice %126 {offsets = [0, 4, 0], sizes = [16, 1, 16], strides = [1, 1, 1]} : vector<16x8x16xf32> to vector<16x1x16xf32>
    %136 = vector.shape_cast %135 : vector<16x1x16xf32> to vector<16x16xf32>
    %137 = vector.extract_strided_slice %126 {offsets = [0, 5, 0], sizes = [16, 1, 16], strides = [1, 1, 1]} : vector<16x8x16xf32> to vector<16x1x16xf32>
    %138 = vector.shape_cast %137 : vector<16x1x16xf32> to vector<16x16xf32>
    %139 = vector.extract_strided_slice %126 {offsets = [0, 6, 0], sizes = [16, 1, 16], strides = [1, 1, 1]} : vector<16x8x16xf32> to vector<16x1x16xf32>
    %140 = vector.shape_cast %139 : vector<16x1x16xf32> to vector<16x16xf32>
    %141 = vector.extract_strided_slice %126 {offsets = [0, 7, 0], sizes = [16, 1, 16], strides = [1, 1, 1]} : vector<16x8x16xf32> to vector<16x1x16xf32>
    %142 = vector.shape_cast %141 : vector<16x1x16xf32> to vector<16x16xf32>
    %143 = tpu.concatenate %128, %130, %132, %134, %136, %138, %140, %142 in 1 : vector<16x16xf32>, vector<16x16xf32>, vector<16x16xf32>, vector<16x16xf32>, vector<16x16xf32>, vector<16x16xf32>, vector<16x16xf32>, vector<16x16xf32> -> vector<16x128xf32>
    %c0_140 = arith.constant 0 : index
    %c0_141 = arith.constant 0 : index
    %144 = vector.load %arg11[%c0_140, %c0_141] : memref<16x128xf32, #tpu.memory_space<vmem>>, vector<16x128xf32>
    tpu.vector_store %arg11[%c0_140, %c0_141], %143 {strides = array<i32>} : memref<16x128xf32, #tpu.memory_space<vmem>>, vector<16x128xf32>,
    return
  }
}

</mosaic_0001>

<llo_original>
// kernel: tile.8
$region0: #{tile.8}
  #allocation0 [shape = 's32[1]{0}', space=sflag, size = 0x4, scoped, tag = 'scoped memory for tile.8']
  %s0 = inlined_call_operand.vmem [shape: f32[4], index: 0, kind: input, shape index: {}]
  %s1 = inlined_call_operand.vmem [shape: f32[4,4], index: 1, kind: output, shape index: {}]
  // Predicated region
  $region2: #{tile.8} parent=0 // pred_check
    _
  $region3: #{tile.8} parent=0 // pred_check_branch
    %3 = sbr.rel (0) target = $region5
  $region4: #{tile.8} parent=0 // pred_region
    _
  $region5: #{tile.8} parent=0 // pred_fallthru
    _
  %v4 = vld [vmem:[%s0] ss:$0 sm:$0xff]
  %5 = vst [vmem:[%s1] sm:$0xf] %v4

// kernel: tile.9
$region0: #{tile.9}
  %s0 = inlined_call_operand.vmem [shape: f32[4,4], index: 0, kind: input, shape index: {}]
  %s1 = inlined_call_operand.vmem [shape: f32[1,16], index: 1, kind: output, shape index: {}]
  $region1: #{tile.9} parent=0
    #allocation0 [shape = 'u8[4096]{0}', space=vmem, size = 0x1000, scoped, tag = 'scoped mem for output reshape']
    #allocation1 [shape = 'u8[4096]{0}', space=vmem, size = 0x1000, scoped, tag = 'scoped mem for input reshape']
    %s3 = sshllo.u32 0, 4
    %v4 = vld [vmem:[%s0] sm:%s3]
    %5 = vst [vmem:[#allocation1] sm:%s3] %v4
    %v6 = vld [vmem:[#allocation1] sm:$0x1]
    %vm7 = vcmask 31744
    %8 = vst.msk [vmem:[#allocation0] sm:$0x1] %vm7, %v6
    %s9 = scalar_lea.vmem [#allocation1], 3
    %v10 = vld [vmem:[%s9] sm:$0x1]
    %11 = vrot.lane.b32.xlu0 %v10, 12
    %v12 = vpop.permute.xlu0 %11
    %vm13 = vcmask 130144
    %14 = vst.msk [vmem:[#allocation0] sm:$0x1] %vm13, %v12
    %s15 = scalar_lea.vmem [#allocation1], 2
    %v16 = vld [vmem:[%s15] sm:$0x1]
    %17 = vrot.lane.b32.xlu0 %v16, 8
    %v18 = vpop.permute.xlu0 %17
    %vm19 = vcmask 97344
    %20 = vst.msk [vmem:[#allocation0] sm:$0x1] %vm19, %v18
    %s21 = scalar_lea.vmem [#allocation1], 1
    %v22 = vld [vmem:[%s21] sm:$0x1]
    %23 = vrot.lane.b32.xlu0 %v22, 4
    %v24 = vpop.permute.xlu0 %23
    %vm25 = vcmask 64544
    %26 = vst.msk [vmem:[#allocation0] sm:$0x1] %vm25, %v24
    %s28 = sshllo.u32 0, 1
    %v30 = vld [vmem:[#allocation0] sm:%s28]
    %s31 = sshllo.u32 0, 1
    %32 = vst [vmem:[%s1] sm:%s31] %v30

// kernel: center2d_forward.1
$region0: #{center2d_forward.1}
  #allocation0 [shape = 'u32[]', space=smem, size = 0x4, offset = 0x4, fixed_abs, tag = 'smem constant byte address 0x4 - core index']
  #allocation1 [shape = 'u32[144,128]{1,0:T(1,128)}', space=vmem, size = 0x12000, scoped, tag = 'internal scratch']
  #allocation2 [shape = 'f32[2,10,10,4]{3,2,1,0:T(8,128)}', space=vmem, size = 0x28000, scoped, tag = 'scratch operand']
  #allocation3 [shape = 'f32[2,10,10,8]{3,2,1,0:T(8,128)}', space=vmem, size = 0x28000, scoped, tag = 'scratch operand']
  %s0 = inlined_call_operand.vmem [shape: f32[4,2,8,8,4], index: 0, kind: input, shape index: {}]
  %s1 = inlined_call_operand.vmem [shape: bf16[36,8], index: 1, kind: input, shape index: {}]
  %s2 = inlined_call_operand.vmem [shape: f32[1,8], index: 2, kind: input, shape index: {}]
  %s3 = inlined_call_operand.vmem [shape: f32[1,8], index: 3, kind: input, shape index: {}]
  %s4 = inlined_call_operand.vmem [shape: f32[1,8], index: 4, kind: input, shape index: {}]
  %s5 = inlined_call_operand.vmem [shape: bf16[72,8], index: 5, kind: input, shape index: {}]
  %s6 = inlined_call_operand.vmem [shape: f32[1,8], index: 6, kind: input, shape index: {}]
  %s7 = inlined_call_operand.vmem [shape: f32[1,8], index: 7, kind: input, shape index: {}]
  %s8 = inlined_call_operand.vmem [shape: f32[1,8], index: 8, kind: input, shape index: {}]
  %s9 = inlined_call_operand.vmem [shape: bf16[8,16], index: 9, kind: input, shape index: {}]
  %s10 = inlined_call_operand.vmem [shape: f32[1,16], index: 10, kind: input, shape index: {}]
  %s11 = inlined_call_operand.vmem [shape: f32[16,128], index: 11, kind: output, shape index: {}]
  %s12 = sld [smem:[#allocation0]]
  $region54: #{center2d_forward.1} parent=0
    _
  %s14 = ssub.s32 1, %s12
  %s15 = scalar_select 0, %s14, %s12
  // Predicated region
  $region2: #{center2d_forward.1} parent=0 // pred_check
    _
  $region3: #{center2d_forward.1} parent=0 // pred_check_branch
    %17 = sbr.rel (0) target = $region5
  $region4: #{center2d_forward.1} parent=0 // pred_region
    _
  $region5: #{center2d_forward.1} parent=0 // pred_fallthru
    _
  // Predicated region
  $region6: #{center2d_forward.1} parent=0 // pred_check
    _
  $region7: #{center2d_forward.1} parent=0 // pred_check_branch
    %19 = sbr.rel (0) target = $region9
  $region8: #{center2d_forward.1} parent=0 // pred_region
    _
  $region9: #{center2d_forward.1} parent=0 // pred_fallthru
    _
  // Predicated region
  $region10: #{center2d_forward.1} parent=0 // pred_check
    _
  $region11: #{center2d_forward.1} parent=0 // pred_check_branch
    %21 = sbr.rel (0) target = $region13
  $region12: #{center2d_forward.1} parent=0 // pred_region
    _
  $region13: #{center2d_forward.1} parent=0 // pred_fallthru
    _
  // Predicated region
  $region14: #{center2d_forward.1} parent=0 // pred_check
    _
  $region15: #{center2d_forward.1} parent=0 // pred_check_branch
    %23 = sbr.rel (0) target = $region17
  $region16: #{center2d_forward.1} parent=0 // pred_region
    _
  $region17: #{center2d_forward.1} parent=0 // pred_fallthru
    _
  // Predicated region
  $region18: #{center2d_forward.1} parent=0 // pred_check
    _
  $region19: #{center2d_forward.1} parent=0 // pred_check_branch
    %25 = sbr.rel (0) target = $region21
  $region20: #{center2d_forward.1} parent=0 // pred_region
    _
  $region21: #{center2d_forward.1} parent=0 // pred_fallthru
    _
  // Predicated region
  $region22: #{center2d_forward.1} parent=0 // pred_check
    _
  $region23: #{center2d_forward.1} parent=0 // pred_check_branch
    %27 = sbr.rel (0) target = $region25
  $region24: #{center2d_forward.1} parent=0 // pred_region
    _
  $region25: #{center2d_forward.1} parent=0 // pred_fallthru
    _
  // Predicated region
  $region26: #{center2d_forward.1} parent=0 // pred_check
    _
  $region27: #{center2d_forward.1} parent=0 // pred_check_branch
    %29 = sbr.rel (0) target = $region29
  $region28: #{center2d_forward.1} parent=0 // pred_region
    _
  $region29: #{center2d_forward.1} parent=0 // pred_fallthru
    _
  // Predicated region
  $region30: #{center2d_forward.1} parent=0 // pred_check
    _
  $region31: #{center2d_forward.1} parent=0 // pred_check_branch
    %31 = sbr.rel (0) target = $region33
  $region32: #{center2d_forward.1} parent=0 // pred_region
    _
  $region33: #{center2d_forward.1} parent=0 // pred_fallthru
    _
  // Predicated region
  $region34: #{center2d_forward.1} parent=0 // pred_check
    _
  $region35: #{center2d_forward.1} parent=0 // pred_check_branch
    %33 = sbr.rel (0) target = $region37
  $region36: #{center2d_forward.1} parent=0 // pred_region
    _
  $region37: #{center2d_forward.1} parent=0 // pred_fallthru
    _
  // Predicated region
  $region38: #{center2d_forward.1} parent=0 // pred_check
    _
  $region39: #{center2d_forward.1} parent=0 // pred_check_branch
    %35 = sbr.rel (0) target = $region41
  $region40: #{center2d_forward.1} parent=0 // pred_region
    _
  $region41: #{center2d_forward.1} parent=0 // pred_fallthru
    _
  // Predicated region
  $region42: #{center2d_forward.1} parent=0 // pred_check
    _
  $region43: #{center2d_forward.1} parent=0 // pred_check_branch
    %37 = sbr.rel (0) target = $region45
  $region44: #{center2d_forward.1} parent=0 // pred_region
    _
  $region45: #{center2d_forward.1} parent=0 // pred_fallthru
    _
  %v39 = vld [vmem:[%s0] sm:$0xff]
  %v40 = vld [vmem:[%s0 + $0x8] sm:$0xff]
  %v41 = vld [vmem:[%s0 + $0x10] sm:$0xff]
  %v42 = vld [vmem:[%s0 + $0x18] sm:$0xff]
  %v43 = vld [vmem:[%s0 + $0x20] sm:$0xff]
  %v44 = vld [vmem:[%s0 + $0x28] sm:$0xff]
  %v45 = vld [vmem:[%s0 + $0x30] sm:$0xff]
  %v46 = vld [vmem:[%s0 + $0x38] sm:$0xff]
  %v47 = vld [vmem:[%s0 + $0x40] sm:$0xff]
  %v48 = vld [vmem:[%s0 + $0x48] sm:$0xff]
  %v49 = vld [vmem:[%s0 + $0x50] sm:$0xff]
  %v50 = vld [vmem:[%s0 + $0x58] sm:$0xff]
  %v51 = vld [vmem:[%s0 + $0x60] sm:$0xff]
  %v52 = vld [vmem:[%s0 + $0x68] sm:$0xff]
  %v53 = vld [vmem:[%s0 + $0x70] sm:$0xff]
  %v54 = vld [vmem:[%s0 + $0x78] sm:$0xff]
  %s55 = scalar_lea.vmem %s0, 128
  %v56 = vld [vmem:[%s55] sm:$0xff]
  %v57 = vld [vmem:[%s55 + $0x8] sm:$0xff]
  %v58 = vld [vmem:[%s55 + $0x10] sm:$0xff]
  %v59 = vld [vmem:[%s55 + $0x18] sm:$0xff]
  %v60 = vld [vmem:[%s55 + $0x20] sm:$0xff]
  %v61 = vld [vmem:[%s55 + $0x28] sm:$0xff]
  %v62 = vld [vmem:[%s55 + $0x30] sm:$0xff]
  %v63 = vld [vmem:[%s55 + $0x38] sm:$0xff]
  %v64 = vld [vmem:[%s55 + $0x40] sm:$0xff]
  %v65 = vld [vmem:[%s55 + $0x48] sm:$0xff]
  %v66 = vld [vmem:[%s55 + $0x50] sm:$0xff]
  %v67 = vld [vmem:[%s55 + $0x58] sm:$0xff]
  %v68 = vld [vmem:[%s55 + $0x60] sm:$0xff]
  %v69 = vld [vmem:[%s55 + $0x68] sm:$0xff]
  %v70 = vld [vmem:[%s55 + $0x70] sm:$0xff]
  %v71 = vld [vmem:[%s55 + $0x78] sm:$0xff]
  %v72 = vmax.f32 %v39, %v56
  %v73 = vmax.f32 %v40, %v57
  %v74 = vmax.f32 %v41, %v58
  %v75 = vmax.f32 %v42, %v59
  %v76 = vmax.f32 %v43, %v60
  %v77 = vmax.f32 %v44, %v61
  %v78 = vmax.f32 %v45, %v62
  %v79 = vmax.f32 %v46, %v63
  %v80 = vmax.f32 %v47, %v64
  %v81 = vmax.f32 %v48, %v65
  %v82 = vmax.f32 %v49, %v66
  %v83 = vmax.f32 %v50, %v67
  %v84 = vmax.f32 %v51, %v68
  %v85 = vmax.f32 %v52, %v69
  %v86 = vmax.f32 %v53, %v70
  %v87 = vmax.f32 %v54, %v71
  %s88 = scalar_lea.vmem %s0, 256
  %v89 = vld [vmem:[%s88] sm:$0xff]
  %v90 = vld [vmem:[%s88 + $0x8] sm:$0xff]
  %v91 = vld [vmem:[%s88 + $0x10] sm:$0xff]
  %v92 = vld [vmem:[%s88 + $0x18] sm:$0xff]
  %v93 = vld [vmem:[%s88 + $0x20] sm:$0xff]
  %v94 = vld [vmem:[%s88 + $0x28] sm:$0xff]
  %v95 = vld [vmem:[%s88 + $0x30] sm:$0xff]
  %v96 = vld [vmem:[%s88 + $0x38] sm:$0xff]
  %v97 = vld [vmem:[%s88 + $0x40] sm:$0xff]
  %v98 = vld [vmem:[%s88 + $0x48] sm:$0xff]
  %v99 = vld [vmem:[%s88 + $0x50] sm:$0xff]
  %v100 = vld [vmem:[%s88 + $0x58] sm:$0xff]
  %v101 = vld [vmem:[%s88 + $0x60] sm:$0xff]
  %v102 = vld [vmem:[%s88 + $0x68] sm:$0xff]
  %v103 = vld [vmem:[%s88 + $0x70] sm:$0xff]
  %v104 = vld [vmem:[%s88 + $0x78] sm:$0xff]
  %s105 = scalar_lea.vmem %s0, 384
  %v106 = vld [vmem:[%s105] sm:$0xff]
  %v107 = vld [vmem:[%s105 + $0x8] sm:$0xff]
  %v108 = vld [vmem:[%s105 + $0x10] sm:$0xff]
  %v109 = vld [vmem:[%s105 + $0x18] sm:$0xff]
  %v110 = vld [vmem:[%s105 + $0x20] sm:$0xff]
  %v111 = vld [vmem:[%s105 + $0x28] sm:$0xff]
  %v112 = vld [vmem:[%s105 + $0x30] sm:$0xff]
  %v113 = vld [vmem:[%s105 + $0x38] sm:$0xff]
  %v114 = vld [vmem:[%s105 + $0x40] sm:$0xff]
  %v115 = vld [vmem:[%s105 + $0x48] sm:$0xff]
  %v116 = vld [vmem:[%s105 + $0x50] sm:$0xff]
  %v117 = vld [vmem:[%s105 + $0x58] sm:$0xff]
  %v118 = vld [vmem:[%s105 + $0x60] sm:$0xff]
  %v119 = vld [vmem:[%s105 + $0x68] sm:$0xff]
  %v120 = vld [vmem:[%s105 + $0x70] sm:$0xff]
  %v121 = vld [vmem:[%s105 + $0x78] sm:$0xff]
  %v122 = vmax.f32 %v89, %v106
  %v123 = vmax.f32 %v90, %v107
  %v124 = vmax.f32 %v91, %v108
  %v125 = vmax.f32 %v92, %v109
  %v126 = vmax.f32 %v93, %v110
  %v127 = vmax.f32 %v94, %v111
  %v128 = vmax.f32 %v95, %v112
  %v129 = vmax.f32 %v96, %v113
  %v130 = vmax.f32 %v97, %v114
  %v131 = vmax.f32 %v98, %v115
  %v132 = vmax.f32 %v99, %v116
  %v133 = vmax.f32 %v100, %v117
  %v134 = vmax.f32 %v101, %v118
  %v135 = vmax.f32 %v102, %v119
  %v136 = vmax.f32 %v103, %v120
  %v137 = vmax.f32 %v104, %v121
  %v138 = vmax.f32 %v72, %v122
  %v139 = vmax.f32 %v73, %v123
  %v140 = vmax.f32 %v74, %v124
  %v141 = vmax.f32 %v75, %v125
  %v142 = vmax.f32 %v76, %v126
  %v143 = vmax.f32 %v77, %v127
  %v144 = vmax.f32 %v78, %v128
  %v145 = vmax.f32 %v79, %v129
  %v146 = vmax.f32 %v80, %v130
  %v147 = vmax.f32 %v81, %v131
  %v148 = vmax.f32 %v82, %v132
  %v149 = vmax.f32 %v83, %v133
  %v150 = vmax.f32 %v84, %v134
  %v151 = vmax.f32 %v85, %v135
  %v152 = vmax.f32 %v86, %v136
  %v153 = vmax.f32 %v87, %v137
  %vm154 = vcmask 31744
  %155 = vst.msk [vmem:[#allocation2] sm:$0xff] %vm154, 0.0
  %vm156 = vcmask 25600
  %157 = vst.msk [vmem:[#allocation2 + $0x8] sm:$0x3] %vm156, 0.0
  %158 = vst.msk [vmem:[#allocation2 + $0x10] sm:$0xff] %vm154, 0.0
  %159 = vst.msk [vmem:[#allocation2 + $0x18] sm:$0x3] %vm156, 0.0
  %160 = vst.msk [vmem:[#allocation2 + $0x20] sm:$0xff] %vm154, 0.0
  %161 = vst.msk [vmem:[#allocation2 + $0x28] sm:$0x3] %vm156, 0.0
  %162 = vst.msk [vmem:[#allocation2 + $0x30] sm:$0xff] %vm154, 0.0
  %163 = vst.msk [vmem:[#allocation2 + $0x38] sm:$0x3] %vm156, 0.0
  %164 = vst.msk [vmem:[#allocation2 + $0x40] sm:$0xff] %vm154, 0.0
  %165 = vst.msk [vmem:[#allocation2 + $0x48] sm:$0x3] %vm156, 0.0
  %166 = vst.msk [vmem:[#allocation2 + $0x50] sm:$0xff] %vm154, 0.0
  %167 = vst.msk [vmem:[#allocation2 + $0x58] sm:$0x3] %vm156, 0.0
  %168 = vst.msk [vmem:[#allocation2 + $0x60] sm:$0xff] %vm154, 0.0
  %169 = vst.msk [vmem:[#allocation2 + $0x68] sm:$0x3] %vm156, 0.0
  %170 = vst.msk [vmem:[#allocation2 + $0x70] sm:$0xff] %vm154, 0.0
  %171 = vst.msk [vmem:[#allocation2 + $0x78] sm:$0x3] %vm156, 0.0
  %172 = vst.msk [vmem:[#allocation2 + $0x80] sm:$0xff] %vm154, 0.0
  %173 = vst.msk [vmem:[#allocation2 + $0x88] sm:$0x3] %vm156, 0.0
  %174 = vst.msk [vmem:[#allocation2 + $0x90] sm:$0xff] %vm154, 0.0
  %175 = vst.msk [vmem:[#allocation2 + $0x98] sm:$0x3] %vm156, 0.0
  %176 = vst.msk [vmem:[#allocation2 + $0xa0] sm:$0xff] %vm154, 0.0
  %177 = vst.msk [vmem:[#allocation2 + $0xa8] sm:$0x3] %vm156, 0.0
  %178 = vst.msk [vmem:[#allocation2 + $0xb0] sm:$0xff] %vm154, 0.0
  %179 = vst.msk [vmem:[#allocation2 + $0xb8] sm:$0x3] %vm156, 0.0
  %180 = vst.msk [vmem:[#allocation2 + $0xc0] sm:$0xff] %vm154, 0.0
  %181 = vst.msk [vmem:[#allocation2 + $0xc8] sm:$0x3] %vm156, 0.0
  %182 = vst.msk [vmem:[#allocation2 + $0xd0] sm:$0xff] %vm154, 0.0
  %183 = vst.msk [vmem:[#allocation2 + $0xd8] sm:$0x3] %vm156, 0.0
  %184 = vst.msk [vmem:[#allocation2 + $0xe0] sm:$0xff] %vm154, 0.0
  %185 = vst.msk [vmem:[#allocation2 + $0xe8] sm:$0x3] %vm156, 0.0
  %186 = vst.msk [vmem:[#allocation2 + $0xf0] sm:$0xff] %vm154, 0.0
  %187 = vst.msk [vmem:[#allocation2 + $0xf8] sm:$0x3] %vm156, 0.0
  %188 = vst.msk [vmem:[#allocation2 + $0x100] sm:$0xff] %vm154, 0.0
  %189 = vst.msk [vmem:[#allocation2 + $0x108] sm:$0x3] %vm156, 0.0
  %190 = vst.msk [vmem:[#allocation2 + $0x110] sm:$0xff] %vm154, 0.0
  %191 = vst.msk [vmem:[#allocation2 + $0x118] sm:$0x3] %vm156, 0.0
  %192 = vst.msk [vmem:[#allocation2 + $0x120] sm:$0xff] %vm154, 0.0
  %193 = vst.msk [vmem:[#allocation2 + $0x128] sm:$0x3] %vm156, 0.0
  %194 = vst.msk [vmem:[#allocation2 + $0x130] sm:$0xff] %vm154, 0.0
  %195 = vst.msk [vmem:[#allocation2 + $0x138] sm:$0x3] %vm156, 0.0
  %s196 = scalar_lea.vmem [#allocation2], 16
  %197 = vst.msk [vmem:[%s196 + $0x1] sm:$0xff] %vm154, %v138
  %198 = vst.msk [vmem:[%s196 + $0x11] sm:$0xff] %vm154, %v139
  %199 = vst.msk [vmem:[%s196 + $0x21] sm:$0xff] %vm154, %v140
  %200 = vst.msk [vmem:[%s196 + $0x31] sm:$0xff] %vm154, %v141
  %201 = vst.msk [vmem:[%s196 + $0x41] sm:$0xff] %vm154, %v142
  %202 = vst.msk [vmem:[%s196 + $0x51] sm:$0xff] %vm154, %v143
  %203 = vst.msk [vmem:[%s196 + $0x61] sm:$0xff] %vm154, %v144
  %204 = vst.msk [vmem:[%s196 + $0x71] sm:$0xff] %vm154, %v145
  %205 = vst.msk [vmem:[%s196 + $0xa1] sm:$0xff] %vm154, %v146
  %206 = vst.msk [vmem:[%s196 + $0xb1] sm:$0xff] %vm154, %v147
  %207 = vst.msk [vmem:[%s196 + $0xc1] sm:$0xff] %vm154, %v148
  %208 = vst.msk [vmem:[%s196 + $0xd1] sm:$0xff] %vm154, %v149
  %209 = vst.msk [vmem:[%s196 + $0xe1] sm:$0xff] %vm154, %v150
  %210 = vst.msk [vmem:[%s196 + $0xf1] sm:$0xff] %vm154, %v151
  %211 = vst.msk [vmem:[%s196 + $0x101] sm:$0xff] %vm154, %v152
  %212 = vst.msk [vmem:[%s196 + $0x111] sm:$0xff] %vm154, %v153
  %v213 = vld [vmem:[#allocation2] sm:$0xff]
  %v214 = vld [vmem:[#allocation2 + $0x10] sm:$0xff]
  %v215 = vld [vmem:[#allocation2 + $0x20] sm:$0xff]
  %v216 = vld [vmem:[#allocation2 + $0x30] sm:$0xff]
  %v217 = vld [vmem:[#allocation2 + $0x40] sm:$0xff]
  %v218 = vld [vmem:[#allocation2 + $0x50] sm:$0xff]
  %v219 = vld [vmem:[#allocation2 + $0x60] sm:$0xff]
  %v220 = vld [vmem:[#allocation2 + $0x70] sm:$0xff]
  %v221 = vld [vmem:[#allocation2 + $0xa0] sm:$0xff]
  %v222 = vld [vmem:[#allocation2 + $0xb0] sm:$0xff]
  %v223 = vld [vmem:[#allocation2 + $0xc0] sm:$0xff]
  %v224 = vld [vmem:[#allocation2 + $0xd0] sm:$0xff]
  %v225 = vld [vmem:[#allocation2 + $0xe0] sm:$0xff]
  %v226 = vld [vmem:[#allocation2 + $0xf0] sm:$0xff]
  %v227 = vld [vmem:[#allocation2 + $0x100] sm:$0xff]
  %v228 = vld [vmem:[#allocation2 + $0x110] sm:$0xff]
  %v229 = vld [vmem:[#allocation2 + $0x1] sm:$0xff]
  %v230 = vld [vmem:[#allocation2 + $0x11] sm:$0xff]
  %v231 = vld [vmem:[#allocation2 + $0x21] sm:$0xff]
  %v232 = vld [vmem:[#allocation2 + $0x31] sm:$0xff]
  %v233 = vld [vmem:[#allocation2 + $0x41] sm:$0xff]
  %v234 = vld [vmem:[#allocation2 + $0x51] sm:$0xff]
  %v235 = vld [vmem:[#allocation2 + $0x61] sm:$0xff]
  %v236 = vld [vmem:[#allocation2 + $0x71] sm:$0xff]
  %v237 = vld [vmem:[#allocation2 + $0xa1] sm:$0xff]
  %v238 = vld [vmem:[#allocation2 + $0xb1] sm:$0xff]
  %v239 = vld [vmem:[#allocation2 + $0xc1] sm:$0xff]
  %v240 = vld [vmem:[#allocation2 + $0xd1] sm:$0xff]
  %v241 = vld [vmem:[#allocation2 + $0xe1] sm:$0xff]
  %v242 = vld [vmem:[#allocation2 + $0xf1] sm:$0xff]
  %v243 = vld [vmem:[#allocation2 + $0x101] sm:$0xff]
  %v244 = vld [vmem:[#allocation2 + $0x111] sm:$0xff]
  %v245 = vld [vmem:[#allocation2 + $0x2] sm:$0xff]
  %v246 = vld [vmem:[#allocation2 + $0x12] sm:$0xff]
  %v247 = vld [vmem:[#allocation2 + $0x22] sm:$0xff]
  %v248 = vld [vmem:[#allocation2 + $0x32] sm:$0xff]
  %v249 = vld [vmem:[#allocation2 + $0x42] sm:$0xff]
  %v250 = vld [vmem:[#allocation2 + $0x52] sm:$0xff]
  %v251 = vld [vmem:[#allocation2 + $0x62] sm:$0xff]
  %v252 = vld [vmem:[#allocation2 + $0x72] sm:$0xff]
  %v253 = vld [vmem:[#allocation2 + $0xa2] sm:$0xff]
  %v254 = vld [vmem:[#allocation2 + $0xb2] sm:$0xff]
  %v255 = vld [vmem:[#allocation2 + $0xc2] sm:$0xff]
  %v256 = vld [vmem:[#allocation2 + $0xd2] sm:$0xff]
  %v257 = vld [vmem:[#allocation2 + $0xe2] sm:$0xff]
  %v258 = vld [vmem:[#allocation2 + $0xf2] sm:$0xff]
  %v259 = vld [vmem:[#allocation2 + $0x102] sm:$0xff]
  %v260 = vld [vmem:[#allocation2 + $0x112] sm:$0xff]
  %v261 = vld [vmem:[%s196] sm:$0xff]
  %v262 = vld [vmem:[%s196 + $0x10] sm:$0xff]
  %v263 = vld [vmem:[%s196 + $0x20] sm:$0xff]
  %v264 = vld [vmem:[%s196 + $0x30] sm:$0xff]
  %v265 = vld [vmem:[%s196 + $0x40] sm:$0xff]
  %v266 = vld [vmem:[%s196 + $0x50] sm:$0xff]
  %v267 = vld [vmem:[%s196 + $0x60] sm:$0xff]
  %v268 = vld [vmem:[%s196 + $0x70] sm:$0xff]
  %v269 = vld [vmem:[%s196 + $0xa0] sm:$0xff]
  %v270 = vld [vmem:[%s196 + $0xb0] sm:$0xff]
  %v271 = vld [vmem:[%s196 + $0xc0] sm:$0xff]
  %v272 = vld [vmem:[%s196 + $0xd0] sm:$0xff]
  %v273 = vld [vmem:[%s196 + $0xe0] sm:$0xff]
  %v274 = vld [vmem:[%s196 + $0xf0] sm:$0xff]
  %v275 = vld [vmem:[%s196 + $0x100] sm:$0xff]
  %v276 = vld [vmem:[%s196 + $0x110] sm:$0xff]
  %v277 = vld [vmem:[%s196 + $0x1] sm:$0xff]
  %v278 = vld [vmem:[%s196 + $0x11] sm:$0xff]
  %v279 = vld [vmem:[%s196 + $0x21] sm:$0xff]
  %v280 = vld [vmem:[%s196 + $0x31] sm:$0xff]
  %v281 = vld [vmem:[%s196 + $0x41] sm:$0xff]
  %v282 = vld [vmem:[%s196 + $0x51] sm:$0xff]
  %v283 = vld [vmem:[%s196 + $0x61] sm:$0xff]
  %v284 = vld [vmem:[%s196 + $0x71] sm:$0xff]
  %v285 = vld [vmem:[%s196 + $0xa1] sm:$0xff]
  %v286 = vld [vmem:[%s196 + $0xb1] sm:$0xff]
  %v287 = vld [vmem:[%s196 + $0xc1] sm:$0xff]
  %v288 = vld [vmem:[%s196 + $0xd1] sm:$0xff]
  %v289 = vld [vmem:[%s196 + $0xe1] sm:$0xff]
  %v290 = vld [vmem:[%s196 + $0xf1] sm:$0xff]
  %v291 = vld [vmem:[%s196 + $0x101] sm:$0xff]
  %v292 = vld [vmem:[%s196 + $0x111] sm:$0xff]
  %v293 = vld [vmem:[%s196 + $0x2] sm:$0xff]
  %v294 = vld [vmem:[%s196 + $0x12] sm:$0xff]
  %v295 = vld [vmem:[%s196 + $0x22] sm:$0xff]
  %v296 = vld [vmem:[%s196 + $0x32] sm:$0xff]
  %v297 = vld [vmem:[%s196 + $0x42] sm:$0xff]
  %v298 = vld [vmem:[%s196 + $0x52] sm:$0xff]
  %v299 = vld [vmem:[%s196 + $0x62] sm:$0xff]
  %v300 = vld [vmem:[%s196 + $0x72] sm:$0xff]
  %v301 = vld [vmem:[%s196 + $0xa2] sm:$0xff]
  %v302 = vld [vmem:[%s196 + $0xb2] sm:$0xff]
  %v303 = vld [vmem:[%s196 + $0xc2] sm:$0xff]
  %v304 = vld [vmem:[%s196 + $0xd2] sm:$0xff]
  %v305 = vld [vmem:[%s196 + $0xe2] sm:$0xff]
  %v306 = vld [vmem:[%s196 + $0xf2] sm:$0xff]
  %v307 = vld [vmem:[%s196 + $0x102] sm:$0xff]
  %v308 = vld [vmem:[%s196 + $0x112] sm:$0xff]
  %s309 = scalar_lea.vmem [#allocation2], 32
  %v310 = vld [vmem:[%s309] sm:$0xff]
  %v311 = vld [vmem:[%s309 + $0x10] sm:$0xff]
  %v312 = vld [vmem:[%s309 + $0x20] sm:$0xff]
  %v313 = vld [vmem:[%s309 + $0x30] sm:$0xff]
  %v314 = vld [vmem:[%s309 + $0x40] sm:$0xff]
  %v315 = vld [vmem:[%s309 + $0x50] sm:$0xff]
  %v316 = vld [vmem:[%s309 + $0x60] sm:$0xff]
  %v317 = vld [vmem:[%s309 + $0x70] sm:$0xff]
  %v318 = vld [vmem:[%s309 + $0xa0] sm:$0xff]
  %v319 = vld [vmem:[%s309 + $0xb0] sm:$0xff]
  %v320 = vld [vmem:[%s309 + $0xc0] sm:$0xff]
  %v321 = vld [vmem:[%s309 + $0xd0] sm:$0xff]
  %v322 = vld [vmem:[%s309 + $0xe0] sm:$0xff]
  %v323 = vld [vmem:[%s309 + $0xf0] sm:$0xff]
  %v324 = vld [vmem:[%s309 + $0x100] sm:$0xff]
  %v325 = vld [vmem:[%s309 + $0x110] sm:$0xff]
  %v326 = vld [vmem:[%s309 + $0x1] sm:$0xff]
  %v327 = vld [vmem:[%s309 + $0x11] sm:$0xff]
  %v328 = vld [vmem:[%s309 + $0x21] sm:$0xff]
  %v329 = vld [vmem:[%s309 + $0x31] sm:$0xff]
  %v330 = vld [vmem:[%s309 + $0x41] sm:$0xff]
  %v331 = vld [vmem:[%s309 + $0x51] sm:$0xff]
  %v332 = vld [vmem:[%s309 + $0x61] sm:$0xff]
  %v333 = vld [vmem:[%s309 + $0x71] sm:$0xff]
  %v334 = vld [vmem:[%s309 + $0xa1] sm:$0xff]
  %v335 = vld [vmem:[%s309 + $0xb1] sm:$0xff]
  %v336 = vld [vmem:[%s309 + $0xc1] sm:$0xff]
  %v337 = vld [vmem:[%s309 + $0xd1] sm:$0xff]
  %v338 = vld [vmem:[%s309 + $0xe1] sm:$0xff]
  %v339 = vld [vmem:[%s309 + $0xf1] sm:$0xff]
  %v340 = vld [vmem:[%s309 + $0x101] sm:$0xff]
  %v341 = vld [vmem:[%s309 + $0x111] sm:$0xff]
  %v342 = vld [vmem:[%s309 + $0x2] sm:$0xff]
  %v343 = vld [vmem:[%s309 + $0x12] sm:$0xff]
  %v344 = vld [vmem:[%s309 + $0x22] sm:$0xff]
  %v345 = vld [vmem:[%s309 + $0x32] sm:$0xff]
  %v346 = vld [vmem:[%s309 + $0x42] sm:$0xff]
  %v347 = vld [vmem:[%s309 + $0x52] sm:$0xff]
  %v348 = vld [vmem:[%s309 + $0x62] sm:$0xff]
  %v349 = vld [vmem:[%s309 + $0x72] sm:$0xff]
  %v350 = vld [vmem:[%s309 + $0xa2] sm:$0xff]
  %v351 = vld [vmem:[%s309 + $0xb2] sm:$0xff]
  %v352 = vld [vmem:[%s309 + $0xc2] sm:$0xff]
  %v353 = vld [vmem:[%s309 + $0xd2] sm:$0xff]
  %v354 = vld [vmem:[%s309 + $0xe2] sm:$0xff]
  %v355 = vld [vmem:[%s309 + $0xf2] sm:$0xff]
  %v356 = vld [vmem:[%s309 + $0x102] sm:$0xff]
  %v357 = vld [vmem:[%s309 + $0x112] sm:$0xff]
  %374 = vrot.lane.b32.xlu0 %v229, 4
  %v375 = vpop.permute.xlu0 %374
  %376 = vrot.lane.b32.xlu0 %v230, 4
  %v377 = vpop.permute.xlu0 %376
  %378 = vrot.lane.b32.xlu0 %v231, 4
  %v379 = vpop.permute.xlu0 %378
  %380 = vrot.lane.b32.xlu0 %v232, 4
  %v381 = vpop.permute.xlu0 %380
  %382 = vrot.lane.b32.xlu0 %v233, 4
  %v383 = vpop.permute.xlu0 %382
  %384 = vrot.lane.b32.xlu0 %v234, 4
  %v385 = vpop.permute.xlu0 %384
  %386 = vrot.lane.b32.xlu0 %v235, 4
  %v387 = vpop.permute.xlu0 %386
  %388 = vrot.lane.b32.xlu0 %v236, 4
  %v389 = vpop.permute.xlu0 %388
  %390 = vrot.lane.b32.xlu0 %v237, 4
  %v391 = vpop.permute.xlu0 %390
  %392 = vrot.lane.b32.xlu0 %v238, 4
  %v393 = vpop.permute.xlu0 %392
  %394 = vrot.lane.b32.xlu0 %v239, 4
  %v395 = vpop.permute.xlu0 %394
  %396 = vrot.lane.b32.xlu0 %v240, 4
  %v397 = vpop.permute.xlu0 %396
  %398 = vrot.lane.b32.xlu0 %v241, 4
  %v399 = vpop.permute.xlu0 %398
  %400 = vrot.lane.b32.xlu0 %v242, 4
  %v401 = vpop.permute.xlu0 %400
  %402 = vrot.lane.b32.xlu0 %v243, 4
  %v403 = vpop.permute.xlu0 %402
  %404 = vrot.lane.b32.xlu0 %v244, 4
  %v405 = vpop.permute.xlu0 %404
  %438 = vrot.lane.b32.xlu0 %v245, 8
  %v439 = vpop.permute.xlu0 %438
  %440 = vrot.lane.b32.xlu0 %v246, 8
  %v441 = vpop.permute.xlu0 %440
  %442 = vrot.lane.b32.xlu0 %v247, 8
  %v443 = vpop.permute.xlu0 %442
  %444 = vrot.lane.b32.xlu0 %v248, 8
  %v445 = vpop.permute.xlu0 %444
  %446 = vrot.lane.b32.xlu0 %v249, 8
  %v447 = vpop.permute.xlu0 %446
  %448 = vrot.lane.b32.xlu0 %v250, 8
  %v449 = vpop.permute.xlu0 %448
  %450 = vrot.lane.b32.xlu0 %v251, 8
  %v451 = vpop.permute.xlu0 %450
  %452 = vrot.lane.b32.xlu0 %v252, 8
  %v453 = vpop.permute.xlu0 %452
  %454 = vrot.lane.b32.xlu0 %v253, 8
  %v455 = vpop.permute.xlu0 %454
  %456 = vrot.lane.b32.xlu0 %v254, 8
  %v457 = vpop.permute.xlu0 %456
  %458 = vrot.lane.b32.xlu0 %v255, 8
  %v459 = vpop.permute.xlu0 %458
  %460 = vrot.lane.b32.xlu0 %v256, 8
  %v461 = vpop.permute.xlu0 %460
  %462 = vrot.lane.b32.xlu0 %v257, 8
  %v463 = vpop.permute.xlu0 %462
  %464 = vrot.lane.b32.xlu0 %v258, 8
  %v465 = vpop.permute.xlu0 %464
  %466 = vrot.lane.b32.xlu0 %v259, 8
  %v467 = vpop.permute.xlu0 %466
  %468 = vrot.lane.b32.xlu0 %v260, 8
  %v469 = vpop.permute.xlu0 %468
  %502 = vrot.lane.b32.xlu0 %v261, 12
  %v503 = vpop.permute.xlu0 %502
  %504 = vrot.lane.b32.xlu0 %v262, 12
  %v505 = vpop.permute.xlu0 %504
  %506 = vrot.lane.b32.xlu0 %v263, 12
  %v507 = vpop.permute.xlu0 %506
  %508 = vrot.lane.b32.xlu0 %v264, 12
  %v509 = vpop.permute.xlu0 %508
  %510 = vrot.lane.b32.xlu0 %v265, 12
  %v511 = vpop.permute.xlu0 %510
  %512 = vrot.lane.b32.xlu0 %v266, 12
  %v513 = vpop.permute.xlu0 %512
  %514 = vrot.lane.b32.xlu0 %v267, 12
  %v515 = vpop.permute.xlu0 %514
  %516 = vrot.lane.b32.xlu0 %v268, 12
  %v517 = vpop.permute.xlu0 %516
  %518 = vrot.lane.b32.xlu0 %v269, 12
  %v519 = vpop.permute.xlu0 %518
  %520 = vrot.lane.b32.xlu0 %v270, 12
  %v521 = vpop.permute.xlu0 %520
  %522 = vrot.lane.b32.xlu0 %v271, 12
  %v523 = vpop.permute.xlu0 %522
  %524 = vrot.lane.b32.xlu0 %v272, 12
  %v525 = vpop.permute.xlu0 %524
  %526 = vrot.lane.b32.xlu0 %v273, 12
  %v527 = vpop.permute.xlu0 %526
  %528 = vrot.lane.b32.xlu0 %v274, 12
  %v529 = vpop.permute.xlu0 %528
  %530 = vrot.lane.b32.xlu0 %v275, 12
  %v531 = vpop.permute.xlu0 %530
  %532 = vrot.lane.b32.xlu0 %v276, 12
  %v533 = vpop.permute.xlu0 %532
  %566 = vrot.lane.b32.xlu0 %v277, 16
  %v567 = vpop.permute.xlu0 %566
  %568 = vrot.lane.b32.xlu0 %v278, 16
  %v569 = vpop.permute.xlu0 %568
  %570 = vrot.lane.b32.xlu0 %v279, 16
  %v571 = vpop.permute.xlu0 %570
  %572 = vrot.lane.b32.xlu0 %v280, 16
  %v573 = vpop.permute.xlu0 %572
  %574 = vrot.lane.b32.xlu0 %v281, 16
  %v575 = vpop.permute.xlu0 %574
  %576 = vrot.lane.b32.xlu0 %v282, 16
  %v577 = vpop.permute.xlu0 %576
  %578 = vrot.lane.b32.xlu0 %v283, 16
  %v579 = vpop.permute.xlu0 %578
  %580 = vrot.lane.b32.xlu0 %v284, 16
  %v581 = vpop.permute.xlu0 %580
  %582 = vrot.lane.b32.xlu0 %v285, 16
  %v583 = vpop.permute.xlu0 %582
  %584 = vrot.lane.b32.xlu0 %v286, 16
  %v585 = vpop.permute.xlu0 %584
  %586 = vrot.lane.b32.xlu0 %v287, 16
  %v587 = vpop.permute.xlu0 %586
  %588 = vrot.lane.b32.xlu0 %v288, 16
  %v589 = vpop.permute.xlu0 %588
  %590 = vrot.lane.b32.xlu0 %v289, 16
  %v591 = vpop.permute.xlu0 %590
  %592 = vrot.lane.b32.xlu0 %v290, 16
  %v593 = vpop.permute.xlu0 %592
  %594 = vrot.lane.b32.xlu0 %v291, 16
  %v595 = vpop.permute.xlu0 %594
  %596 = vrot.lane.b32.xlu0 %v292, 16
  %v597 = vpop.permute.xlu0 %596
  %630 = vrot.lane.b32.xlu0 %v293, 20
  %v631 = vpop.permute.xlu0 %630
  %632 = vrot.lane.b32.xlu0 %v294, 20
  %v633 = vpop.permute.xlu0 %632
  %634 = vrot.lane.b32.xlu0 %v295, 20
  %v635 = vpop.permute.xlu0 %634
  %636 = vrot.lane.b32.xlu0 %v296, 20
  %v637 = vpop.permute.xlu0 %636
  %638 = vrot.lane.b32.xlu0 %v297, 20
  %v639 = vpop.permute.xlu0 %638
  %640 = vrot.lane.b32.xlu0 %v298, 20
  %v641 = vpop.permute.xlu0 %640
  %642 = vrot.lane.b32.xlu0 %v299, 20
  %v643 = vpop.permute.xlu0 %642
  %644 = vrot.lane.b32.xlu0 %v300, 20
  %v645 = vpop.permute.xlu0 %644
  %646 = vrot.lane.b32.xlu0 %v301, 20
  %v647 = vpop.permute.xlu0 %646
  %648 = vrot.lane.b32.xlu0 %v302, 20
  %v649 = vpop.permute.xlu0 %648
  %650 = vrot.lane.b32.xlu0 %v303, 20
  %v651 = vpop.permute.xlu0 %650
  %652 = vrot.lane.b32.xlu0 %v304, 20
  %v653 = vpop.permute.xlu0 %652
  %654 = vrot.lane.b32.xlu0 %v305, 20
  %v655 = vpop.permute.xlu0 %654
  %656 = vrot.lane.b32.xlu0 %v306, 20
  %v657 = vpop.permute.xlu0 %656
  %658 = vrot.lane.b32.xlu0 %v307, 20
  %v659 = vpop.permute.xlu0 %658
  %660 = vrot.lane.b32.xlu0 %v308, 20
  %v661 = vpop.permute.xlu0 %660
  %694 = vrot.lane.b32.xlu0 %v310, 24
  %v695 = vpop.permute.xlu0 %694
  %696 = vrot.lane.b32.xlu0 %v311, 24
  %v697 = vpop.permute.xlu0 %696
  %698 = vrot.lane.b32.xlu0 %v312, 24
  %v699 = vpop.permute.xlu0 %698
  %700 = vrot.lane.b32.xlu0 %v313, 24
  %v701 = vpop.permute.xlu0 %700
  %702 = vrot.lane.b32.xlu0 %v314, 24
  %v703 = vpop.permute.xlu0 %702
  %704 = vrot.lane.b32.xlu0 %v315, 24
  %v705 = vpop.permute.xlu0 %704
  %706 = vrot.lane.b32.xlu0 %v316, 24
  %v707 = vpop.permute.xlu0 %706
  %708 = vrot.lane.b32.xlu0 %v317, 24
  %v709 = vpop.permute.xlu0 %708
  %710 = vrot.lane.b32.xlu0 %v318, 24
  %v711 = vpop.permute.xlu0 %710
  %712 = vrot.lane.b32.xlu0 %v319, 24
  %v713 = vpop.permute.xlu0 %712
  %714 = vrot.lane.b32.xlu0 %v320, 24
  %v715 = vpop.permute.xlu0 %714
  %716 = vrot.lane.b32.xlu0 %v321, 24
  %v717 = vpop.permute.xlu0 %716
  %718 = vrot.lane.b32.xlu0 %v322, 24
  %v719 = vpop.permute.xlu0 %718
  %720 = vrot.lane.b32.xlu0 %v323, 24
  %v721 = vpop.permute.xlu0 %720
  %722 = vrot.lane.b32.xlu0 %v324, 24
  %v723 = vpop.permute.xlu0 %722
  %724 = vrot.lane.b32.xlu0 %v325, 24
  %v725 = vpop.permute.xlu0 %724
  %758 = vrot.lane.b32.xlu0 %v326, 28
  %v759 = vpop.permute.xlu0 %758
  %760 = vrot.lane.b32.xlu0 %v327, 28
  %v761 = vpop.permute.xlu0 %760
  %762 = vrot.lane.b32.xlu0 %v328, 28
  %v763 = vpop.permute.xlu0 %762
  %764 = vrot.lane.b32.xlu0 %v329, 28
  %v765 = vpop.permute.xlu0 %764
  %766 = vrot.lane.b32.xlu0 %v330, 28
  %v767 = vpop.permute.xlu0 %766
  %768 = vrot.lane.b32.xlu0 %v331, 28
  %v769 = vpop.permute.xlu0 %768
  %770 = vrot.lane.b32.xlu0 %v332, 28
  %v771 = vpop.permute.xlu0 %770
  %772 = vrot.lane.b32.xlu0 %v333, 28
  %v773 = vpop.permute.xlu0 %772
  %774 = vrot.lane.b32.xlu0 %v334, 28
  %v775 = vpop.permute.xlu0 %774
  %776 = vrot.lane.b32.xlu0 %v335, 28
  %v777 = vpop.permute.xlu0 %776
  %778 = vrot.lane.b32.xlu0 %v336, 28
  %v779 = vpop.permute.xlu0 %778
  %780 = vrot.lane.b32.xlu0 %v337, 28
  %v781 = vpop.permute.xlu0 %780
  %782 = vrot.lane.b32.xlu0 %v338, 28
  %v783 = vpop.permute.xlu0 %782
  %784 = vrot.lane.b32.xlu0 %v339, 28
  %v785 = vpop.permute.xlu0 %784
  %786 = vrot.lane.b32.xlu0 %v340, 28
  %v787 = vpop.permute.xlu0 %786
  %788 = vrot.lane.b32.xlu0 %v341, 28
  %v789 = vpop.permute.xlu0 %788
  %822 = vrot.lane.b32.xlu0 %v342, 32
  %v823 = vpop.permute.xlu0 %822
  %824 = vrot.lane.b32.xlu0 %v343, 32
  %v825 = vpop.permute.xlu0 %824
  %826 = vrot.lane.b32.xlu0 %v344, 32
  %v827 = vpop.permute.xlu0 %826
  %828 = vrot.lane.b32.xlu0 %v345, 32
  %v829 = vpop.permute.xlu0 %828
  %830 = vrot.lane.b32.xlu0 %v346, 32
  %v831 = vpop.permute.xlu0 %830
  %832 = vrot.lane.b32.xlu0 %v347, 32
  %v833 = vpop.permute.xlu0 %832
  %834 = vrot.lane.b32.xlu0 %v348, 32
  %v835 = vpop.permute.xlu0 %834
  %836 = vrot.lane.b32.xlu0 %v349, 32
  %v837 = vpop.permute.xlu0 %836
  %838 = vrot.lane.b32.xlu0 %v350, 32
  %v839 = vpop.permute.xlu0 %838
  %840 = vrot.lane.b32.xlu0 %v351, 32
  %v841 = vpop.permute.xlu0 %840
  %842 = vrot.lane.b32.xlu0 %v352, 32
  %v843 = vpop.permute.xlu0 %842
  %844 = vrot.lane.b32.xlu0 %v353, 32
  %v845 = vpop.permute.xlu0 %844
  %846 = vrot.lane.b32.xlu0 %v354, 32
  %v847 = vpop.permute.xlu0 %846
  %848 = vrot.lane.b32.xlu0 %v355, 32
  %v849 = vpop.permute.xlu0 %848
  %850 = vrot.lane.b32.xlu0 %v356, 32
  %v851 = vpop.permute.xlu0 %850
  %852 = vrot.lane.b32.xlu0 %v357, 32
  %v853 = vpop.permute.xlu0 %852
  %v870 = vsel %vm154, %v213, %v375
  %v871 = vsel %vm154, %v214, %v377
  %v872 = vsel %vm154, %v215, %v379
  %v873 = vsel %vm154, %v216, %v381
  %v874 = vsel %vm154, %v217, %v383
  %v875 = vsel %vm154, %v218, %v385
  %v876 = vsel %vm154, %v219, %v387
  %v877 = vsel %vm154, %v220, %v389
  %v878 = vsel %vm154, %v221, %v391
  %v879 = vsel %vm154, %v222, %v393
  %v880 = vsel %vm154, %v223, %v395
  %v881 = vsel %vm154, %v224, %v397
  %v882 = vsel %vm154, %v225, %v399
  %v883 = vsel %vm154, %v226, %v401
  %v884 = vsel %vm154, %v227, %v403
  %v885 = vsel %vm154, %v228, %v405
  %vm886 = vcmask 64512
  %v887 = vsel %vm886, %v870, %v439
  %v888 = vsel %vm886, %v871, %v441
  %v889 = vsel %vm886, %v872, %v443
  %v890 = vsel %vm886, %v873, %v445
  %v891 = vsel %vm886, %v874, %v447
  %v892 = vsel %vm886, %v875, %v449
  %v893 = vsel %vm886, %v876, %v451
  %v894 = vsel %vm886, %v877, %v453
  %v895 = vsel %vm886, %v878, %v455
  %v896 = vsel %vm886, %v879, %v457
  %v897 = vsel %vm886, %v880, %v459
  %v898 = vsel %vm886, %v881, %v461
  %v899 = vsel %vm886, %v882, %v463
  %v900 = vsel %vm886, %v883, %v465
  %v901 = vsel %vm886, %v884, %v467
  %v902 = vsel %vm886, %v885, %v469
  %vm903 = vcmask 97280
  %v904 = vsel %vm903, %v887, %v503
  %v905 = vsel %vm903, %v888, %v505
  %v906 = vsel %vm903, %v889, %v507
  %v907 = vsel %vm903, %v890, %v509
  %v908 = vsel %vm903, %v891, %v511
  %v909 = vsel %vm903, %v892, %v513
  %v910 = vsel %vm903, %v893, %v515
  %v911 = vsel %vm903, %v894, %v517
  %v912 = vsel %vm903, %v895, %v519
  %v913 = vsel %vm903, %v896, %v521
  %v914 = vsel %vm903, %v897, %v523
  %v915 = vsel %vm903, %v898, %v525
  %v916 = vsel %vm903, %v899, %v527
  %v917 = vsel %vm903, %v900, %v529
  %v918 = vsel %vm903, %v901, %v531
  %v919 = vsel %vm903, %v902, %v533
  %vm920 = vcmask 130048
  %v921 = vsel %vm920, %v904, %v567
  %v922 = vsel %vm920, %v905, %v569
  %v923 = vsel %vm920, %v906, %v571
  %v924 = vsel %vm920, %v907, %v573
  %v925 = vsel %vm920, %v908, %v575
  %v926 = vsel %vm920, %v909, %v577
  %v927 = vsel %vm920, %v910, %v579
  %v928 = vsel %vm920, %v911, %v581
  %v929 = vsel %vm920, %v912, %v583
  %v930 = vsel %vm920, %v913, %v585
  %v931 = vsel %vm920, %v914, %v587
  %v932 = vsel %vm920, %v915, %v589
  %v933 = vsel %vm920, %v916, %v591
  %v934 = vsel %vm920, %v917, %v593
  %v935 = vsel %vm920, %v918, %v595
  %v936 = vsel %vm920, %v919, %v597
  %vm937 = vcmask 162816
  %v938 = vsel %vm937, %v921, %v631
  %v939 = vsel %vm937, %v922, %v633
  %v940 = vsel %vm937, %v923, %v635
  %v941 = vsel %vm937, %v924, %v637
  %v942 = vsel %vm937, %v925, %v639
  %v943 = vsel %vm937, %v926, %v641
  %v944 = vsel %vm937, %v927, %v643
  %v945 = vsel %vm937, %v928, %v645
  %v946 = vsel %vm937, %v929, %v647
  %v947 = vsel %vm937, %v930, %v649
  %v948 = vsel %vm937, %v931, %v651
  %v949 = vsel %vm937, %v932, %v653
  %v950 = vsel %vm937, %v933, %v655
  %v951 = vsel %vm937, %v934, %v657
  %v952 = vsel %vm937, %v935, %v659
  %v953 = vsel %vm937, %v936, %v661
  %vm954 = vcmask 195584
  %v955 = vsel %vm954, %v938, %v695
  %v956 = vsel %vm954, %v939, %v697
  %v957 = vsel %vm954, %v940, %v699
  %v958 = vsel %vm954, %v941, %v701
  %v959 = vsel %vm954, %v942, %v703
  %v960 = vsel %vm954, %v943, %v705
  %v961 = vsel %vm954, %v944, %v707
  %v962 = vsel %vm954, %v945, %v709
  %v963 = vsel %vm954, %v946, %v711
  %v964 = vsel %vm954, %v947, %v713
  %v965 = vsel %vm954, %v948, %v715
  %v966 = vsel %vm954, %v949, %v717
  %v967 = vsel %vm954, %v950, %v719
  %v968 = vsel %vm954, %v951, %v721
  %v969 = vsel %vm954, %v952, %v723
  %v970 = vsel %vm954, %v953, %v725
  %vm971 = vcmask 228352
  %v972 = vsel %vm971, %v955, %v759
  %v973 = vsel %vm971, %v956, %v761
  %v974 = vsel %vm971, %v957, %v763
  %v975 = vsel %vm971, %v958, %v765
  %v976 = vsel %vm971, %v959, %v767
  %v977 = vsel %vm971, %v960, %v769
  %v978 = vsel %vm971, %v961, %v771
  %v979 = vsel %vm971, %v962, %v773
  %v980 = vsel %vm971, %v963, %v775
  %v981 = vsel %vm971, %v964, %v777
  %v982 = vsel %vm971, %v965, %v779
  %v983 = vsel %vm971, %v966, %v781
  %v984 = vsel %vm971, %v967, %v783
  %v985 = vsel %vm971, %v968, %v785
  %v986 = vsel %vm971, %v969, %v787
  %v987 = vsel %vm971, %v970, %v789
  %vm988 = vcmask 261120
  %v989 = vsel %vm988, %v972, %v823
  %v990 = vsel %vm988, %v973, %v825
  %v991 = vsel %vm988, %v974, %v827
  %v992 = vsel %vm988, %v975, %v829
  %v993 = vsel %vm988, %v976, %v831
  %v994 = vsel %vm988, %v977, %v833
  %v995 = vsel %vm988, %v978, %v835
  %v996 = vsel %vm988, %v979, %v837
  %v997 = vsel %vm988, %v980, %v839
  %v998 = vsel %vm988, %v981, %v841
  %v999 = vsel %vm988, %v982, %v843
  %v1000 = vsel %vm988, %v983, %v845
  %v1001 = vsel %vm988, %v984, %v847
  %v1002 = vsel %vm988, %v985, %v849
  %v1003 = vsel %vm988, %v986, %v851
  %v1004 = vsel %vm988, %v987, %v853
  %v1005 = vpack.c.bf16 %v990, %v989
  %v1006 = vpack.c.bf16 %v992, %v991
  %v1007 = vpack.c.bf16 %v994, %v993
  %v1008 = vpack.c.bf16 %v996, %v995
  %v1009 = vpack.c.bf16 %v998, %v997
  %v1010 = vpack.c.bf16 %v1000, %v999
  %v1011 = vpack.c.bf16 %v1002, %v1001
  %v1012 = vpack.c.bf16 %v1004, %v1003
  %v1013 = vld [vmem:[%s1] sm:$0xf]
  %v1014 = vld [vmem:[%s1 + $0x4] sm:$0xf]
  %v1015 = vld [vmem:[%s1 + $0x8] sm:$0xf]
  %v1016 = vld [vmem:[%s1 + $0xc] sm:$0xf]
  %v1017 = vld [vmem:[%s1 + $0x10] sm:$0x3]
  %v1018 = vld [vmem:[%s2] sm:$0x1]
  %v1020 = vlaneseq
  %v1021 = vshrl.u32 %v1020, 7
  %v1022 = vsub.s32 0, %v1021
  %v1023 = vrot.slane %v1018, %v1022
  %v1030 = vunpack.c.l.b16 %v1013
  %v1031 = vunpack.c.l.b16 %v1014
  %v1032 = vunpack.c.l.b16 %v1015
  %v1033 = vunpack.c.l.b16 %v1016
  %v1034 = vunpack.c.l.b16 %v1017
  %v1035 = vpack.c.b16 %v1031, %v1030
  %v1036 = vpack.c.b16 %v1033, %v1032
  %v1037 = vpack.c.b16 %v1034, %v1034
  %vm1040 = vcmask 293888
  %v1042 = vsel %vm1040, %v1005, 0
  %v1045 = vsel %vm1040, %v1006, 0
  %v1048 = vsel %vm1040, %v1007, 0
  %v1051 = vsel %vm1040, %v1008, 0
  %v1054 = vsel %vm1040, %v1009, 0
  %v1057 = vsel %vm1040, %v1010, 0
  %v1060 = vsel %vm1040, %v1011, 0
  %v1063 = vsel %vm1040, %v1012, 0
  %vm1065 = vcmask 1041408
  %v1067 = vsel %vm1065, %v1037, 0
  %1069 = vmatprep.subr.bf16.mxu0 0
  %1070 = vmatpush1.bf16.msra.mxu0 %v1035
  %1071 = vmatprep.subr.bf16.mxu0 0
  %1072 = vmatpush1.bf16.msra.mxu0 %v1036
  %1073 = vmatprep.subr.bf16.mxu0 0
  %1074 = vmatpush1.bf16.msra.mxu0 %v1067
  %1075 = vmatprep.subr.bf16.mxu0 0
  %1076 = vmatpush1.bf16.msra.mxu0 0
  %1077 = vmatprep.subr.bf16.mxu0 0
  %1078 = vmatpush1.bf16.msra.mxu0 0
  %1079 = vmatprep.subr.bf16.mxu0 0
  %1080 = vmatpush1.bf16.msra.mxu0 0
  %1081 = vmatprep.subr.bf16.mxu0 0
  %1082 = vmatpush1.bf16.msra.mxu0 0
  %1083 = vmatprep.subr.bf16.mxu0 0
  %1084 = vmatpush1.bf16.msra.mxu0 0
  %1085 = vmatprep.subr.bf16.mxu0 0
  %1086 = vmatpush1.bf16.msra.mxu0 0
  %1087 = vmatprep.subr.bf16.mxu0 0
  %1088 = vmatpush1.bf16.msra.mxu0 0
  %1089 = vmatprep.subr.bf16.mxu0 0
  %1090 = vmatpush1.bf16.msra.mxu0 0
  %1091 = vmatprep.subr.bf16.mxu0 0
  %1092 = vmatpush1.bf16.msra.mxu0 0
  %1093 = vmatprep.subr.bf16.mxu0 0
  %1094 = vmatpush1.bf16.msra.mxu0 0
  %1095 = vmatprep.subr.bf16.mxu0 0
  %1096 = vmatpush1.bf16.msra.mxu0 0
  %1097 = vmatprep.subr.bf16.mxu0 0
  %1098 = vmatpush1.bf16.msra.mxu0 0
  %1099 = vmatprep.subr.bf16.mxu0 0
  %1100 = vmatpush1.bf16.msra.mxu0 0
  %1101 = vmatprep.mubr.bf16.mxu0 0
  %1102 = vmatmul.mubr.bf16.gmra.mrb[0].mxu0 %v1042
  %v1103 = vpop.f32.mrb[0].mxu0
  %v1104 = vadd.f32 %v1023, %v1103
  %v1105 = vpop.f32.mrb[0].mxu0
  %v1106 = vpop.f32.mrb[0].mxu0
  %v1107 = vadd.f32 %v1023, %v1106
  %v1108 = vpop.f32.mrb[0].mxu0
  %1109 = vmatprep.mubr.bf16.mxu0 0
  %1110 = vmatmul.mubr.bf16.gmra.mrb[0].mxu0 %v1045
  %v1111 = vpop.f32.mrb[0].mxu0
  %v1112 = vadd.f32 %v1023, %v1111
  %v1113 = vpop.f32.mrb[0].mxu0
  %v1114 = vpop.f32.mrb[0].mxu0
  %v1115 = vadd.f32 %v1023, %v1114
  %v1116 = vpop.f32.mrb[0].mxu0
  %1117 = vmatprep.mubr.bf16.mxu0 0
  %1118 = vmatmul.mubr.bf16.gmra.mrb[0].mxu0 %v1048
  %v1119 = vpop.f32.mrb[0].mxu0
  %v1120 = vadd.f32 %v1023, %v1119
  %v1121 = vpop.f32.mrb[0].mxu0
  %v1122 = vpop.f32.mrb[0].mxu0
  %v1123 = vadd.f32 %v1023, %v1122
  %v1124 = vpop.f32.mrb[0].mxu0
  %1125 = vmatprep.mubr.bf16.mxu0 0
  %1126 = vmatmul.mubr.bf16.gmra.mrb[0].mxu0 %v1051
  %v1127 = vpop.f32.mrb[0].mxu0
  %v1128 = vadd.f32 %v1023, %v1127
  %v1129 = vpop.f32.mrb[0].mxu0
  %v1130 = vpop.f32.mrb[0].mxu0
  %v1131 = vadd.f32 %v1023, %v1130
  %v1132 = vpop.f32.mrb[0].mxu0
  %1133 = vmatprep.mubr.bf16.mxu0 0
  %1134 = vmatmul.mubr.bf16.gmra.mrb[0].mxu0 %v1054
  %v1135 = vpop.f32.mrb[0].mxu0
  %v1136 = vadd.f32 %v1023, %v1135
  %v1137 = vpop.f32.mrb[0].mxu0
  %v1138 = vpop.f32.mrb[0].mxu0
  %v1139 = vadd.f32 %v1023, %v1138
  %v1140 = vpop.f32.mrb[0].mxu0
  %1141 = vmatprep.mubr.bf16.mxu0 0
  %1142 = vmatmul.mubr.bf16.gmra.mrb[0].mxu0 %v1057
  %v1143 = vpop.f32.mrb[0].mxu0
  %v1144 = vadd.f32 %v1023, %v1143
  %v1145 = vpop.f32.mrb[0].mxu0
  %v1146 = vpop.f32.mrb[0].mxu0
  %v1147 = vadd.f32 %v1023, %v1146
  %v1148 = vpop.f32.mrb[0].mxu0
  %1149 = vmatprep.mubr.bf16.mxu0 0
  %1150 = vmatmul.mubr.bf16.gmra.mrb[0].mxu0 %v1060
  %v1151 = vpop.f32.mrb[0].mxu0
  %v1152 = vadd.f32 %v1023, %v1151
  %v1153 = vpop.f32.mrb[0].mxu0
  %v1154 = vpop.f32.mrb[0].mxu0
  %v1155 = vadd.f32 %v1023, %v1154
  %v1156 = vpop.f32.mrb[0].mxu0
  %1157 = vmatprep.mubr.bf16.mxu0 0
  %1158 = vmatmul.mubr.bf16.gmra.mrb[0].mxu0 %v1063
  %v1159 = vpop.f32.mrb[0].mxu0
  %v1160 = vadd.f32 %v1023, %v1159
  %v1161 = vpop.f32.mrb[0].mxu0
  %v1162 = vpop.f32.mrb[0].mxu0
  %v1163 = vadd.f32 %v1023, %v1162
  %v1164 = vpop.f32.mrb[0].mxu0
  %1165 = vdwg.mxu0
  %v1166 = vsel %vm886, %v1104, 0.0
  %v1167 = vsel %vm886, %v1107, 0.0
  %v1168 = vadd.f32 %v1166, %v1167
  %v1169 = vsel %vm886, %v1112, 0.0
  %v1170 = vadd.f32 %v1168, %v1169
  %v1171 = vsel %vm886, %v1115, 0.0
  %v1172 = vadd.f32 %v1170, %v1171
  %v1173 = vsel %vm886, %v1120, 0.0
  %v1174 = vadd.f32 %v1172, %v1173
  %v1175 = vsel %vm886, %v1123, 0.0
  %v1176 = vadd.f32 %v1174, %v1175
  %v1177 = vsel %vm886, %v1128, 0.0
  %v1178 = vadd.f32 %v1176, %v1177
  %v1179 = vsel %vm886, %v1131, 0.0
  %v1180 = vadd.f32 %v1178, %v1179
  %v1181 = vsel %vm886, %v1136, 0.0
  %v1182 = vadd.f32 %v1180, %v1181
  %v1183 = vsel %vm886, %v1139, 0.0
  %v1184 = vadd.f32 %v1182, %v1183
  %v1185 = vsel %vm886, %v1144, 0.0
  %v1186 = vadd.f32 %v1184, %v1185
  %v1187 = vsel %vm886, %v1147, 0.0
  %v1188 = vadd.f32 %v1186, %v1187
  %v1189 = vsel %vm886, %v1152, 0.0
  %v1190 = vadd.f32 %v1188, %v1189
  %v1191 = vsel %vm886, %v1155, 0.0
  %v1192 = vadd.f32 %v1190, %v1191
  %v1193 = vsel %vm886, %v1160, 0.0
  %v1194 = vadd.f32 %v1192, %v1193
  %v1195 = vsel %vm886, %v1163, 0.0
  %v1196 = vadd.f32 %v1194, %v1195
  %v1197 = vrot.slane %v1196, 4
  %v1198 = vadd.f32 %v1196, %v1197
  %v1199 = vrot.slane %v1198, 2
  %v1200 = vadd.f32 %v1198, %v1199
  %v1201 = vrot.slane %v1200, 1
  %v1202 = vadd.f32 %v1200, %v1201
  %v1203 = vrcp.pop 128.0
  %v1204 = vmul.f32 %v1202, %v1203
  %v1205 = vsub.f32 %v1104, %v1204
  %v1206 = vsub.f32 %v1107, %v1204
  %v1207 = vsub.f32 %v1112, %v1204
  %v1208 = vsub.f32 %v1115, %v1204
  %v1209 = vsub.f32 %v1120, %v1204
  %v1210 = vsub.f32 %v1123, %v1204
  %v1211 = vsub.f32 %v1128, %v1204
  %v1212 = vsub.f32 %v1131, %v1204
  %v1213 = vsub.f32 %v1136, %v1204
  %v1214 = vsub.f32 %v1139, %v1204
  %v1215 = vsub.f32 %v1144, %v1204
  %v1216 = vsub.f32 %v1147, %v1204
  %v1217 = vsub.f32 %v1152, %v1204
  %v1218 = vsub.f32 %v1155, %v1204
  %v1219 = vsub.f32 %v1160, %v1204
  %v1220 = vsub.f32 %v1163, %v1204
  %v1221 = vmul.f32 %v1205, %v1205
  %v1222 = vmul.f32 %v1206, %v1206
  %v1223 = vmul.f32 %v1207, %v1207
  %v1224 = vmul.f32 %v1208, %v1208
  %v1225 = vmul.f32 %v1209, %v1209
  %v1226 = vmul.f32 %v1210, %v1210
  %v1227 = vmul.f32 %v1211, %v1211
  %v1228 = vmul.f32 %v1212, %v1212
  %v1229 = vmul.f32 %v1213, %v1213
  %v1230 = vmul.f32 %v1214, %v1214
  %v1231 = vmul.f32 %v1215, %v1215
  %v1232 = vmul.f32 %v1216, %v1216
  %v1233 = vmul.f32 %v1217, %v1217
  %v1234 = vmul.f32 %v1218, %v1218
  %v1235 = vmul.f32 %v1219, %v1219
  %v1236 = vmul.f32 %v1220, %v1220
  %v1237 = vsel %vm886, %v1221, 0.0
  %v1238 = vsel %vm886, %v1222, 0.0
  %v1239 = vadd.f32 %v1237, %v1238
  %v1240 = vsel %vm886, %v1223, 0.0
  %v1241 = vadd.f32 %v1239, %v1240
  %v1242 = vsel %vm886, %v1224, 0.0
  %v1243 = vadd.f32 %v1241, %v1242
  %v1244 = vsel %vm886, %v1225, 0.0
  %v1245 = vadd.f32 %v1243, %v1244
  %v1246 = vsel %vm886, %v1226, 0.0
  %v1247 = vadd.f32 %v1245, %v1246
  %v1248 = vsel %vm886, %v1227, 0.0
  %v1249 = vadd.f32 %v1247, %v1248
  %v1250 = vsel %vm886, %v1228, 0.0
  %v1251 = vadd.f32 %v1249, %v1250
  %v1252 = vsel %vm886, %v1229, 0.0
  %v1253 = vadd.f32 %v1251, %v1252
  %v1254 = vsel %vm886, %v1230, 0.0
  %v1255 = vadd.f32 %v1253, %v1254
  %v1256 = vsel %vm886, %v1231, 0.0
  %v1257 = vadd.f32 %v1255, %v1256
  %v1258 = vsel %vm886, %v1232, 0.0
  %v1259 = vadd.f32 %v1257, %v1258
  %v1260 = vsel %vm886, %v1233, 0.0
  %v1261 = vadd.f32 %v1259, %v1260
  %v1262 = vsel %vm886, %v1234, 0.0
  %v1263 = vadd.f32 %v1261, %v1262
  %v1264 = vsel %vm886, %v1235, 0.0
  %v1265 = vadd.f32 %v1263, %v1264
  %v1266 = vsel %vm886, %v1236, 0.0
  %v1267 = vadd.f32 %v1265, %v1266
  %v1268 = vrot.slane %v1267, 4
  %v1269 = vadd.f32 %v1267, %v1268
  %v1270 = vrot.slane %v1269, 2
  %v1271 = vadd.f32 %v1269, %v1270
  %v1272 = vrot.slane %v1271, 1
  %v1273 = vadd.f32 %v1271, %v1272
  %v1274 = vmul.f32 %v1273, %v1203
  %v1275 = vadd.f32 %v1274, 1e-05
  %v1276 = vrsqrt.pop %v1275
  %v1277 = vmul.f32 %v1205, %v1276
  %v1278 = vmul.f32 %v1206, %v1276
  %v1279 = vmul.f32 %v1207, %v1276
  %v1280 = vmul.f32 %v1208, %v1276
  %v1281 = vmul.f32 %v1209, %v1276
  %v1282 = vmul.f32 %v1210, %v1276
  %v1283 = vmul.f32 %v1211, %v1276
  %v1284 = vmul.f32 %v1212, %v1276
  %v1285 = vmul.f32 %v1213, %v1276
  %v1286 = vmul.f32 %v1214, %v1276
  %v1287 = vmul.f32 %v1215, %v1276
  %v1288 = vmul.f32 %v1216, %v1276
  %v1289 = vmul.f32 %v1217, %v1276
  %v1290 = vmul.f32 %v1218, %v1276
  %v1291 = vmul.f32 %v1219, %v1276
  %v1292 = vmul.f32 %v1220, %v1276
  %v1293 = vld [vmem:[%s3] sm:$0x1]
  %v1295 = vlaneseq
  %v1296 = vshrl.u32 %v1295, 7
  %v1297 = vsub.s32 0, %v1296
  %v1298 = vrot.slane %v1293, %v1297
  %v1300 = vmul.f32 %v1277, %v1298
  %v1301 = vmul.f32 %v1278, %v1298
  %v1302 = vmul.f32 %v1279, %v1298
  %v1303 = vmul.f32 %v1280, %v1298
  %v1304 = vmul.f32 %v1281, %v1298
  %v1305 = vmul.f32 %v1282, %v1298
  %v1306 = vmul.f32 %v1283, %v1298
  %v1307 = vmul.f32 %v1284, %v1298
  %v1308 = vmul.f32 %v1285, %v1298
  %v1309 = vmul.f32 %v1286, %v1298
  %v1310 = vmul.f32 %v1287, %v1298
  %v1311 = vmul.f32 %v1288, %v1298
  %v1312 = vmul.f32 %v1289, %v1298
  %v1313 = vmul.f32 %v1290, %v1298
  %v1314 = vmul.f32 %v1291, %v1298
  %v1315 = vmul.f32 %v1292, %v1298
  %v1316 = vld [vmem:[%s4] sm:$0x1]
  %v1318 = vlaneseq
  %v1319 = vshrl.u32 %v1318, 7
  %v1320 = vsub.s32 0, %v1319
  %v1321 = vrot.slane %v1316, %v1320
  %v1323 = vadd.f32 %v1300, %v1321
  %v1324 = vadd.f32 %v1301, %v1321
  %v1325 = vadd.f32 %v1302, %v1321
  %v1326 = vadd.f32 %v1303, %v1321
  %v1327 = vadd.f32 %v1304, %v1321
  %v1328 = vadd.f32 %v1305, %v1321
  %v1329 = vadd.f32 %v1306, %v1321
  %v1330 = vadd.f32 %v1307, %v1321
  %v1331 = vadd.f32 %v1308, %v1321
  %v1332 = vadd.f32 %v1309, %v1321
  %v1333 = vadd.f32 %v1310, %v1321
  %v1334 = vadd.f32 %v1311, %v1321
  %v1335 = vadd.f32 %v1312, %v1321
  %v1336 = vadd.f32 %v1313, %v1321
  %v1337 = vadd.f32 %v1314, %v1321
  %v1338 = vadd.f32 %v1315, %v1321
  %v1339 = vmax.f32 %v1323, 0.0
  %v1340 = vmax.f32 %v1324, 0.0
  %v1341 = vmax.f32 %v1325, 0.0
  %v1342 = vmax.f32 %v1326, 0.0
  %v1343 = vmax.f32 %v1327, 0.0
  %v1344 = vmax.f32 %v1328, 0.0
  %v1345 = vmax.f32 %v1329, 0.0
  %v1346 = vmax.f32 %v1330, 0.0
  %v1347 = vmax.f32 %v1331, 0.0
  %v1348 = vmax.f32 %v1332, 0.0
  %v1349 = vmax.f32 %v1333, 0.0
  %v1350 = vmax.f32 %v1334, 0.0
  %v1351 = vmax.f32 %v1335, 0.0
  %v1352 = vmax.f32 %v1336, 0.0
  %v1353 = vmax.f32 %v1337, 0.0
  %v1354 = vmax.f32 %v1338, 0.0
  %1355 = vst.msk [vmem:[#allocation3] sm:$0xff] %vm886, 0.0
  %vm1356 = vcmask 58368
  %1357 = vst.msk [vmem:[#allocation3 + $0x8] sm:$0x3] %vm1356, 0.0
  %1358 = vst.msk [vmem:[#allocation3 + $0x10] sm:$0xff] %vm886, 0.0
  %1359 = vst.msk [vmem:[#allocation3 + $0x18] sm:$0x3] %vm1356, 0.0
  %1360 = vst.msk [vmem:[#allocation3 + $0x20] sm:$0xff] %vm886, 0.0
  %1361 = vst.msk [vmem:[#allocation3 + $0x28] sm:$0x3] %vm1356, 0.0
  %1362 = vst.msk [vmem:[#allocation3 + $0x30] sm:$0xff] %vm886, 0.0
  %1363 = vst.msk [vmem:[#allocation3 + $0x38] sm:$0x3] %vm1356, 0.0
  %1364 = vst.msk [vmem:[#allocation3 + $0x40] sm:$0xff] %vm886, 0.0
  %1365 = vst.msk [vmem:[#allocation3 + $0x48] sm:$0x3] %vm1356, 0.0
  %1366 = vst.msk [vmem:[#allocation3 + $0x50] sm:$0xff] %vm886, 0.0
  %1367 = vst.msk [vmem:[#allocation3 + $0x58] sm:$0x3] %vm1356, 0.0
  %1368 = vst.msk [vmem:[#allocation3 + $0x60] sm:$0xff] %vm886, 0.0
  %1369 = vst.msk [vmem:[#allocation3 + $0x68] sm:$0x3] %vm1356, 0.0
  %1370 = vst.msk [vmem:[#allocation3 + $0x70] sm:$0xff] %vm886, 0.0
  %1371 = vst.msk [vmem:[#allocation3 + $0x78] sm:$0x3] %vm1356, 0.0
  %1372 = vst.msk [vmem:[#allocation3 + $0x80] sm:$0xff] %vm886, 0.0
  %1373 = vst.msk [vmem:[#allocation3 + $0x88] sm:$0x3] %vm1356, 0.0
  %1374 = vst.msk [vmem:[#allocation3 + $0x90] sm:$0xff] %vm886, 0.0
  %1375 = vst.msk [vmem:[#allocation3 + $0x98] sm:$0x3] %vm1356, 0.0
  %1376 = vst.msk [vmem:[#allocation3 + $0xa0] sm:$0xff] %vm886, 0.0
  %1377 = vst.msk [vmem:[#allocation3 + $0xa8] sm:$0x3] %vm1356, 0.0
  %1378 = vst.msk [vmem:[#allocation3 + $0xb0] sm:$0xff] %vm886, 0.0
  %1379 = vst.msk [vmem:[#allocation3 + $0xb8] sm:$0x3] %vm1356, 0.0
  %1380 = vst.msk [vmem:[#allocation3 + $0xc0] sm:$0xff] %vm886, 0.0
  %1381 = vst.msk [vmem:[#allocation3 + $0xc8] sm:$0x3] %vm1356, 0.0
  %1382 = vst.msk [vmem:[#allocation3 + $0xd0] sm:$0xff] %vm886, 0.0
  %1383 = vst.msk [vmem:[#allocation3 + $0xd8] sm:$0x3] %vm1356, 0.0
  %1384 = vst.msk [vmem:[#allocation3 + $0xe0] sm:$0xff] %vm886, 0.0
  %1385 = vst.msk [vmem:[#allocation3 + $0xe8] sm:$0x3] %vm1356, 0.0
  %1386 = vst.msk [vmem:[#allocation3 + $0xf0] sm:$0xff] %vm886, 0.0
  %1387 = vst.msk [vmem:[#allocation3 + $0xf8] sm:$0x3] %vm1356, 0.0
  %1388 = vst.msk [vmem:[#allocation3 + $0x100] sm:$0xff] %vm886, 0.0
  %1389 = vst.msk [vmem:[#allocation3 + $0x108] sm:$0x3] %vm1356, 0.0
  %1390 = vst.msk [vmem:[#allocation3 + $0x110] sm:$0xff] %vm886, 0.0
  %1391 = vst.msk [vmem:[#allocation3 + $0x118] sm:$0x3] %vm1356, 0.0
  %1392 = vst.msk [vmem:[#allocation3 + $0x120] sm:$0xff] %vm886, 0.0
  %1393 = vst.msk [vmem:[#allocation3 + $0x128] sm:$0x3] %vm1356, 0.0
  %1394 = vst.msk [vmem:[#allocation3 + $0x130] sm:$0xff] %vm886, 0.0
  %1395 = vst.msk [vmem:[#allocation3 + $0x138] sm:$0x3] %vm1356, 0.0
  %s1396 = scalar_lea.vmem [#allocation3], 16
  %1397 = vst.msk [vmem:[%s1396 + $0x1] sm:$0xff] %vm886, %v1339
  %1398 = vst.msk [vmem:[%s1396 + $0x11] sm:$0xff] %vm886, %v1340
  %1399 = vst.msk [vmem:[%s1396 + $0x21] sm:$0xff] %vm886, %v1341
  %1400 = vst.msk [vmem:[%s1396 + $0x31] sm:$0xff] %vm886, %v1342
  %1401 = vst.msk [vmem:[%s1396 + $0x41] sm:$0xff] %vm886, %v1343
  %1402 = vst.msk [vmem:[%s1396 + $0x51] sm:$0xff] %vm886, %v1344
  %1403 = vst.msk [vmem:[%s1396 + $0x61] sm:$0xff] %vm886, %v1345
  %1404 = vst.msk [vmem:[%s1396 + $0x71] sm:$0xff] %vm886, %v1346
  %1405 = vst.msk [vmem:[%s1396 + $0xa1] sm:$0xff] %vm886, %v1347
  %1406 = vst.msk [vmem:[%s1396 + $0xb1] sm:$0xff] %vm886, %v1348
  %1407 = vst.msk [vmem:[%s1396 + $0xc1] sm:$0xff] %vm886, %v1349
  %1408 = vst.msk [vmem:[%s1396 + $0xd1] sm:$0xff] %vm886, %v1350
  %1409 = vst.msk [vmem:[%s1396 + $0xe1] sm:$0xff] %vm886, %v1351
  %1410 = vst.msk [vmem:[%s1396 + $0xf1] sm:$0xff] %vm886, %v1352
  %1411 = vst.msk [vmem:[%s1396 + $0x101] sm:$0xff] %vm886, %v1353
  %1412 = vst.msk [vmem:[%s1396 + $0x111] sm:$0xff] %vm886, %v1354
  %v1413 = vld [vmem:[#allocation3] sm:$0xff]
  %v1414 = vld [vmem:[#allocation3 + $0x10] sm:$0xff]
  %v1415 = vld [vmem:[#allocation3 + $0x20] sm:$0xff]
  %v1416 = vld [vmem:[#allocation3 + $0x30] sm:$0xff]
  %v1417 = vld [vmem:[#allocation3 + $0x40] sm:$0xff]
  %v1418 = vld [vmem:[#allocation3 + $0x50] sm:$0xff]
  %v1419 = vld [vmem:[#allocation3 + $0x60] sm:$0xff]
  %v1420 = vld [vmem:[#allocation3 + $0x70] sm:$0xff]
  %v1421 = vld [vmem:[#allocation3 + $0xa0] sm:$0xff]
  %v1422 = vld [vmem:[#allocation3 + $0xb0] sm:$0xff]
  %v1423 = vld [vmem:[#allocation3 + $0xc0] sm:$0xff]
  %v1424 = vld [vmem:[#allocation3 + $0xd0] sm:$0xff]
  %v1425 = vld [vmem:[#allocation3 + $0xe0] sm:$0xff]
  %v1426 = vld [vmem:[#allocation3 + $0xf0] sm:$0xff]
  %v1427 = vld [vmem:[#allocation3 + $0x100] sm:$0xff]
  %v1428 = vld [vmem:[#allocation3 + $0x110] sm:$0xff]
  %v1429 = vld [vmem:[#allocation3 + $0x1] sm:$0xff]
  %v1430 = vld [vmem:[#allocation3 + $0x11] sm:$0xff]
  %v1431 = vld [vmem:[#allocation3 + $0x21] sm:$0xff]
  %v1432 = vld [vmem:[#allocation3 + $0x31] sm:$0xff]
  %v1433 = vld [vmem:[#allocation3 + $0x41] sm:$0xff]
  %v1434 = vld [vmem:[#allocation3 + $0x51] sm:$0xff]
  %v1435 = vld [vmem:[#allocation3 + $0x61] sm:$0xff]
  %v1436 = vld [vmem:[#allocation3 + $0x71] sm:$0xff]
  %v1437 = vld [vmem:[#allocation3 + $0xa1] sm:$0xff]
  %v1438 = vld [vmem:[#allocation3 + $0xb1] sm:$0xff]
  %v1439 = vld [vmem:[#allocation3 + $0xc1] sm:$0xff]
  %v1440 = vld [vmem:[#allocation3 + $0xd1] sm:$0xff]
  %v1441 = vld [vmem:[#allocation3 + $0xe1] sm:$0xff]
  %v1442 = vld [vmem:[#allocation3 + $0xf1] sm:$0xff]
  %v1443 = vld [vmem:[#allocation3 + $0x101] sm:$0xff]
  %v1444 = vld [vmem:[#allocation3 + $0x111] sm:$0xff]
  %v1445 = vld [vmem:[#allocation3 + $0x2] sm:$0xff]
  %v1446 = vld [vmem:[#allocation3 + $0x12] sm:$0xff]
  %v1447 = vld [vmem:[#allocation3 + $0x22] sm:$0xff]
  %v1448 = vld [vmem:[#allocation3 + $0x32] sm:$0xff]
  %v1449 = vld [vmem:[#allocation3 + $0x42] sm:$0xff]
  %v1450 = vld [vmem:[#allocation3 + $0x52] sm:$0xff]
  %v1451 = vld [vmem:[#allocation3 + $0x62] sm:$0xff]
  %v1452 = vld [vmem:[#allocation3 + $0x72] sm:$0xff]
  %v1453 = vld [vmem:[#allocation3 + $0xa2] sm:$0xff]
  %v1454 = vld [vmem:[#allocation3 + $0xb2] sm:$0xff]
  %v1455 = vld [vmem:[#allocation3 + $0xc2] sm:$0xff]
  %v1456 = vld [vmem:[#allocation3 + $0xd2] sm:$0xff]
  %v1457 = vld [vmem:[#allocation3 + $0xe2] sm:$0xff]
  %v1458 = vld [vmem:[#allocation3 + $0xf2] sm:$0xff]
  %v1459 = vld [vmem:[#allocation3 + $0x102] sm:$0xff]
  %v1460 = vld [vmem:[#allocation3 + $0x112] sm:$0xff]
  %v1461 = vld [vmem:[%s1396] sm:$0xff]
  %v1462 = vld [vmem:[%s1396 + $0x10] sm:$0xff]
  %v1463 = vld [vmem:[%s1396 + $0x20] sm:$0xff]
  %v1464 = vld [vmem:[%s1396 + $0x30] sm:$0xff]
  %v1465 = vld [vmem:[%s1396 + $0x40] sm:$0xff]
  %v1466 = vld [vmem:[%s1396 + $0x50] sm:$0xff]
  %v1467 = vld [vmem:[%s1396 + $0x60] sm:$0xff]
  %v1468 = vld [vmem:[%s1396 + $0x70] sm:$0xff]
  %v1469 = vld [vmem:[%s1396 + $0xa0] sm:$0xff]
  %v1470 = vld [vmem:[%s1396 + $0xb0] sm:$0xff]
  %v1471 = vld [vmem:[%s1396 + $0xc0] sm:$0xff]
  %v1472 = vld [vmem:[%s1396 + $0xd0] sm:$0xff]
  %v1473 = vld [vmem:[%s1396 + $0xe0] sm:$0xff]
  %v1474 = vld [vmem:[%s1396 + $0xf0] sm:$0xff]
  %v1475 = vld [vmem:[%s1396 + $0x100] sm:$0xff]
  %v1476 = vld [vmem:[%s1396 + $0x110] sm:$0xff]
  %v1477 = vld [vmem:[%s1396 + $0x1] sm:$0xff]
  %v1478 = vld [vmem:[%s1396 + $0x11] sm:$0xff]
  %v1479 = vld [vmem:[%s1396 + $0x21] sm:$0xff]
  %v1480 = vld [vmem:[%s1396 + $0x31] sm:$0xff]
  %v1481 = vld [vmem:[%s1396 + $0x41] sm:$0xff]
  %v1482 = vld [vmem:[%s1396 + $0x51] sm:$0xff]
  %v1483 = vld [vmem:[%s1396 + $0x61] sm:$0xff]
  %v1484 = vld [vmem:[%s1396 + $0x71] sm:$0xff]
  %v1485 = vld [vmem:[%s1396 + $0xa1] sm:$0xff]
  %v1486 = vld [vmem:[%s1396 + $0xb1] sm:$0xff]
  %v1487 = vld [vmem:[%s1396 + $0xc1] sm:$0xff]
  %v1488 = vld [vmem:[%s1396 + $0xd1] sm:$0xff]
  %v1489 = vld [vmem:[%s1396 + $0xe1] sm:$0xff]
  %v1490 = vld [vmem:[%s1396 + $0xf1] sm:$0xff]
  %v1491 = vld [vmem:[%s1396 + $0x101] sm:$0xff]
  %v1492 = vld [vmem:[%s1396 + $0x111] sm:$0xff]
  %v1493 = vld [vmem:[%s1396 + $0x2] sm:$0xff]
  %v1494 = vld [vmem:[%s1396 + $0x12] sm:$0xff]
  %v1495 = vld [vmem:[%s1396 + $0x22] sm:$0xff]
  %v1496 = vld [vmem:[%s1396 + $0x32] sm:$0xff]
  %v1497 = vld [vmem:[%s1396 + $0x42] sm:$0xff]
  %v1498 = vld [vmem:[%s1396 + $0x52] sm:$0xff]
  %v1499 = vld [vmem:[%s1396 + $0x62] sm:$0xff]
  %v1500 = vld [vmem:[%s1396 + $0x72] sm:$0xff]
  %v1501 = vld [vmem:[%s1396 + $0xa2] sm:$0xff]
  %v1502 = vld [vmem:[%s1396 + $0xb2] sm:$0xff]
  %v1503 = vld [vmem:[%s1396 + $0xc2] sm:$0xff]
  %v1504 = vld [vmem:[%s1396 + $0xd2] sm:$0xff]
  %v1505 = vld [vmem:[%s1396 + $0xe2] sm:$0xff]
  %v1506 = vld [vmem:[%s1396 + $0xf2] sm:$0xff]
  %v1507 = vld [vmem:[%s1396 + $0x102] sm:$0xff]
  %v1508 = vld [vmem:[%s1396 + $0x112] sm:$0xff]
  %s1509 = scalar_lea.vmem [#allocation3], 32
  %v1510 = vld [vmem:[%s1509] sm:$0xff]
  %v1511 = vld [vmem:[%s1509 + $0x10] sm:$0xff]
  %v1512 = vld [vmem:[%s1509 + $0x20] sm:$0xff]
  %v1513 = vld [vmem:[%s1509 + $0x30] sm:$0xff]
  %v1514 = vld [vmem:[%s1509 + $0x40] sm:$0xff]
  %v1515 = vld [vmem:[%s1509 + $0x50] sm:$0xff]
  %v1516 = vld [vmem:[%s1509 + $0x60] sm:$0xff]
  %v1517 = vld [vmem:[%s1509 + $0x70] sm:$0xff]
  %v1518 = vld [vmem:[%s1509 + $0xa0] sm:$0xff]
  %v1519 = vld [vmem:[%s1509 + $0xb0] sm:$0xff]
  %v1520 = vld [vmem:[%s1509 + $0xc0] sm:$0xff]
  %v1521 = vld [vmem:[%s1509 + $0xd0] sm:$0xff]
  %v1522 = vld [vmem:[%s1509 + $0xe0] sm:$0xff]
  %v1523 = vld [vmem:[%s1509 + $0xf0] sm:$0xff]
  %v1524 = vld [vmem:[%s1509 + $0x100] sm:$0xff]
  %v1525 = vld [vmem:[%s1509 + $0x110] sm:$0xff]
  %v1526 = vld [vmem:[%s1509 + $0x1] sm:$0xff]
  %v1527 = vld [vmem:[%s1509 + $0x11] sm:$0xff]
  %v1528 = vld [vmem:[%s1509 + $0x21] sm:$0xff]
  %v1529 = vld [vmem:[%s1509 + $0x31] sm:$0xff]
  %v1530 = vld [vmem:[%s1509 + $0x41] sm:$0xff]
  %v1531 = vld [vmem:[%s1509 + $0x51] sm:$0xff]
  %v1532 = vld [vmem:[%s1509 + $0x61] sm:$0xff]
  %v1533 = vld [vmem:[%s1509 + $0x71] sm:$0xff]
  %v1534 = vld [vmem:[%s1509 + $0xa1] sm:$0xff]
  %v1535 = vld [vmem:[%s1509 + $0xb1] sm:$0xff]
  %v1536 = vld [vmem:[%s1509 + $0xc1] sm:$0xff]
  %v1537 = vld [vmem:[%s1509 + $0xd1] sm:$0xff]
  %v1538 = vld [vmem:[%s1509 + $0xe1] sm:$0xff]
  %v1539 = vld [vmem:[%s1509 + $0xf1] sm:$0xff]
  %v1540 = vld [vmem:[%s1509 + $0x101] sm:$0xff]
  %v1541 = vld [vmem:[%s1509 + $0x111] sm:$0xff]
  %v1542 = vld [vmem:[%s1509 + $0x2] sm:$0xff]
  %v1543 = vld [vmem:[%s1509 + $0x12] sm:$0xff]
  %v1544 = vld [vmem:[%s1509 + $0x22] sm:$0xff]
  %v1545 = vld [vmem:[%s1509 + $0x32] sm:$0xff]
  %v1546 = vld [vmem:[%s1509 + $0x42] sm:$0xff]
  %v1547 = vld [vmem:[%s1509 + $0x52] sm:$0xff]
  %v1548 = vld [vmem:[%s1509 + $0x62] sm:$0xff]
  %v1549 = vld [vmem:[%s1509 + $0x72] sm:$0xff]
  %v1550 = vld [vmem:[%s1509 + $0xa2] sm:$0xff]
  %v1551 = vld [vmem:[%s1509 + $0xb2] sm:$0xff]
  %v1552 = vld [vmem:[%s1509 + $0xc2] sm:$0xff]
  %v1553 = vld [vmem:[%s1509 + $0xd2] sm:$0xff]
  %v1554 = vld [vmem:[%s1509 + $0xe2] sm:$0xff]
  %v1555 = vld [vmem:[%s1509 + $0xf2] sm:$0xff]
  %v1556 = vld [vmem:[%s1509 + $0x102] sm:$0xff]
  %v1557 = vld [vmem:[%s1509 + $0x112] sm:$0xff]
  %1574 = vrot.lane.b32.xlu0 %v1429, 8
  %v1575 = vpop.permute.xlu0 %1574
  %1576 = vrot.lane.b32.xlu0 %v1430, 8
  %v1577 = vpop.permute.xlu0 %1576
  %1578 = vrot.lane.b32.xlu0 %v1431, 8
  %v1579 = vpop.permute.xlu0 %1578
  %1580 = vrot.lane.b32.xlu0 %v1432, 8
  %v1581 = vpop.permute.xlu0 %1580
  %1582 = vrot.lane.b32.xlu0 %v1433, 8
  %v1583 = vpop.permute.xlu0 %1582
  %1584 = vrot.lane.b32.xlu0 %v1434, 8
  %v1585 = vpop.permute.xlu0 %1584
  %1586 = vrot.lane.b32.xlu0 %v1435, 8
  %v1587 = vpop.permute.xlu0 %1586
  %1588 = vrot.lane.b32.xlu0 %v1436, 8
  %v1589 = vpop.permute.xlu0 %1588
  %1590 = vrot.lane.b32.xlu0 %v1437, 8
  %v1591 = vpop.permute.xlu0 %1590
  %1592 = vrot.lane.b32.xlu0 %v1438, 8
  %v1593 = vpop.permute.xlu0 %1592
  %1594 = vrot.lane.b32.xlu0 %v1439, 8
  %v1595 = vpop.permute.xlu0 %1594
  %1596 = vrot.lane.b32.xlu0 %v1440, 8
  %v1597 = vpop.permute.xlu0 %1596
  %1598 = vrot.lane.b32.xlu0 %v1441, 8
  %v1599 = vpop.permute.xlu0 %1598
  %1600 = vrot.lane.b32.xlu0 %v1442, 8
  %v1601 = vpop.permute.xlu0 %1600
  %1602 = vrot.lane.b32.xlu0 %v1443, 8
  %v1603 = vpop.permute.xlu0 %1602
  %1604 = vrot.lane.b32.xlu0 %v1444, 8
  %v1605 = vpop.permute.xlu0 %1604
  %1638 = vrot.lane.b32.xlu0 %v1445, 16
  %v1639 = vpop.permute.xlu0 %1638
  %1640 = vrot.lane.b32.xlu0 %v1446, 16
  %v1641 = vpop.permute.xlu0 %1640
  %1642 = vrot.lane.b32.xlu0 %v1447, 16
  %v1643 = vpop.permute.xlu0 %1642
  %1644 = vrot.lane.b32.xlu0 %v1448, 16
  %v1645 = vpop.permute.xlu0 %1644
  %1646 = vrot.lane.b32.xlu0 %v1449, 16
  %v1647 = vpop.permute.xlu0 %1646
  %1648 = vrot.lane.b32.xlu0 %v1450, 16
  %v1649 = vpop.permute.xlu0 %1648
  %1650 = vrot.lane.b32.xlu0 %v1451, 16
  %v1651 = vpop.permute.xlu0 %1650
  %1652 = vrot.lane.b32.xlu0 %v1452, 16
  %v1653 = vpop.permute.xlu0 %1652
  %1654 = vrot.lane.b32.xlu0 %v1453, 16
  %v1655 = vpop.permute.xlu0 %1654
  %1656 = vrot.lane.b32.xlu0 %v1454, 16
  %v1657 = vpop.permute.xlu0 %1656
  %1658 = vrot.lane.b32.xlu0 %v1455, 16
  %v1659 = vpop.permute.xlu0 %1658
  %1660 = vrot.lane.b32.xlu0 %v1456, 16
  %v1661 = vpop.permute.xlu0 %1660
  %1662 = vrot.lane.b32.xlu0 %v1457, 16
  %v1663 = vpop.permute.xlu0 %1662
  %1664 = vrot.lane.b32.xlu0 %v1458, 16
  %v1665 = vpop.permute.xlu0 %1664
  %1666 = vrot.lane.b32.xlu0 %v1459, 16
  %v1667 = vpop.permute.xlu0 %1666
  %1668 = vrot.lane.b32.xlu0 %v1460, 16
  %v1669 = vpop.permute.xlu0 %1668
  %1702 = vrot.lane.b32.xlu0 %v1461, 24
  %v1703 = vpop.permute.xlu0 %1702
  %1704 = vrot.lane.b32.xlu0 %v1462, 24
  %v1705 = vpop.permute.xlu0 %1704
  %1706 = vrot.lane.b32.xlu0 %v1463, 24
  %v1707 = vpop.permute.xlu0 %1706
  %1708 = vrot.lane.b32.xlu0 %v1464, 24
  %v1709 = vpop.permute.xlu0 %1708
  %1710 = vrot.lane.b32.xlu0 %v1465, 24
  %v1711 = vpop.permute.xlu0 %1710
  %1712 = vrot.lane.b32.xlu0 %v1466, 24
  %v1713 = vpop.permute.xlu0 %1712
  %1714 = vrot.lane.b32.xlu0 %v1467, 24
  %v1715 = vpop.permute.xlu0 %1714
  %1716 = vrot.lane.b32.xlu0 %v1468, 24
  %v1717 = vpop.permute.xlu0 %1716
  %1718 = vrot.lane.b32.xlu0 %v1469, 24
  %v1719 = vpop.permute.xlu0 %1718
  %1720 = vrot.lane.b32.xlu0 %v1470, 24
  %v1721 = vpop.permute.xlu0 %1720
  %1722 = vrot.lane.b32.xlu0 %v1471, 24
  %v1723 = vpop.permute.xlu0 %1722
  %1724 = vrot.lane.b32.xlu0 %v1472, 24
  %v1725 = vpop.permute.xlu0 %1724
  %1726 = vrot.lane.b32.xlu0 %v1473, 24
  %v1727 = vpop.permute.xlu0 %1726
  %1728 = vrot.lane.b32.xlu0 %v1474, 24
  %v1729 = vpop.permute.xlu0 %1728
  %1730 = vrot.lane.b32.xlu0 %v1475, 24
  %v1731 = vpop.permute.xlu0 %1730
  %1732 = vrot.lane.b32.xlu0 %v1476, 24
  %v1733 = vpop.permute.xlu0 %1732
  %1766 = vrot.lane.b32.xlu0 %v1477, 32
  %v1767 = vpop.permute.xlu0 %1766
  %1768 = vrot.lane.b32.xlu0 %v1478, 32
  %v1769 = vpop.permute.xlu0 %1768
  %1770 = vrot.lane.b32.xlu0 %v1479, 32
  %v1771 = vpop.permute.xlu0 %1770
  %1772 = vrot.lane.b32.xlu0 %v1480, 32
  %v1773 = vpop.permute.xlu0 %1772
  %1774 = vrot.lane.b32.xlu0 %v1481, 32
  %v1775 = vpop.permute.xlu0 %1774
  %1776 = vrot.lane.b32.xlu0 %v1482, 32
  %v1777 = vpop.permute.xlu0 %1776
  %1778 = vrot.lane.b32.xlu0 %v1483, 32
  %v1779 = vpop.permute.xlu0 %1778
  %1780 = vrot.lane.b32.xlu0 %v1484, 32
  %v1781 = vpop.permute.xlu0 %1780
  %1782 = vrot.lane.b32.xlu0 %v1485, 32
  %v1783 = vpop.permute.xlu0 %1782
  %1784 = vrot.lane.b32.xlu0 %v1486, 32
  %v1785 = vpop.permute.xlu0 %1784
  %1786 = vrot.lane.b32.xlu0 %v1487, 32
  %v1787 = vpop.permute.xlu0 %1786
  %1788 = vrot.lane.b32.xlu0 %v1488, 32
  %v1789 = vpop.permute.xlu0 %1788
  %1790 = vrot.lane.b32.xlu0 %v1489, 32
  %v1791 = vpop.permute.xlu0 %1790
  %1792 = vrot.lane.b32.xlu0 %v1490, 32
  %v1793 = vpop.permute.xlu0 %1792
  %1794 = vrot.lane.b32.xlu0 %v1491, 32
  %v1795 = vpop.permute.xlu0 %1794
  %1796 = vrot.lane.b32.xlu0 %v1492, 32
  %v1797 = vpop.permute.xlu0 %1796
  %1830 = vrot.lane.b32.xlu0 %v1493, 40
  %v1831 = vpop.permute.xlu0 %1830
  %1832 = vrot.lane.b32.xlu0 %v1494, 40
  %v1833 = vpop.permute.xlu0 %1832
  %1834 = vrot.lane.b32.xlu0 %v1495, 40
  %v1835 = vpop.permute.xlu0 %1834
  %1836 = vrot.lane.b32.xlu0 %v1496, 40
  %v1837 = vpop.permute.xlu0 %1836
  %1838 = vrot.lane.b32.xlu0 %v1497, 40
  %v1839 = vpop.permute.xlu0 %1838
  %1840 = vrot.lane.b32.xlu0 %v1498, 40
  %v1841 = vpop.permute.xlu0 %1840
  %1842 = vrot.lane.b32.xlu0 %v1499, 40
  %v1843 = vpop.permute.xlu0 %1842
  %1844 = vrot.lane.b32.xlu0 %v1500, 40
  %v1845 = vpop.permute.xlu0 %1844
  %1846 = vrot.lane.b32.xlu0 %v1501, 40
  %v1847 = vpop.permute.xlu0 %1846
  %1848 = vrot.lane.b32.xlu0 %v1502, 40
  %v1849 = vpop.permute.xlu0 %1848
  %1850 = vrot.lane.b32.xlu0 %v1503, 40
  %v1851 = vpop.permute.xlu0 %1850
  %1852 = vrot.lane.b32.xlu0 %v1504, 40
  %v1853 = vpop.permute.xlu0 %1852
  %1854 = vrot.lane.b32.xlu0 %v1505, 40
  %v1855 = vpop.permute.xlu0 %1854
  %1856 = vrot.lane.b32.xlu0 %v1506, 40
  %v1857 = vpop.permute.xlu0 %1856
  %1858 = vrot.lane.b32.xlu0 %v1507, 40
  %v1859 = vpop.permute.xlu0 %1858
  %1860 = vrot.lane.b32.xlu0 %v1508, 40
  %v1861 = vpop.permute.xlu0 %1860
  %1894 = vrot.lane.b32.xlu0 %v1510, 48
  %v1895 = vpop.permute.xlu0 %1894
  %1896 = vrot.lane.b32.xlu0 %v1511, 48
  %v1897 = vpop.permute.xlu0 %1896
  %1898 = vrot.lane.b32.xlu0 %v1512, 48
  %v1899 = vpop.permute.xlu0 %1898
  %1900 = vrot.lane.b32.xlu0 %v1513, 48
  %v1901 = vpop.permute.xlu0 %1900
  %1902 = vrot.lane.b32.xlu0 %v1514, 48
  %v1903 = vpop.permute.xlu0 %1902
  %1904 = vrot.lane.b32.xlu0 %v1515, 48
  %v1905 = vpop.permute.xlu0 %1904
  %1906 = vrot.lane.b32.xlu0 %v1516, 48
  %v1907 = vpop.permute.xlu0 %1906
  %1908 = vrot.lane.b32.xlu0 %v1517, 48
  %v1909 = vpop.permute.xlu0 %1908
  %1910 = vrot.lane.b32.xlu0 %v1518, 48
  %v1911 = vpop.permute.xlu0 %1910
  %1912 = vrot.lane.b32.xlu0 %v1519, 48
  %v1913 = vpop.permute.xlu0 %1912
  %1914 = vrot.lane.b32.xlu0 %v1520, 48
  %v1915 = vpop.permute.xlu0 %1914
  %1916 = vrot.lane.b32.xlu0 %v1521, 48
  %v1917 = vpop.permute.xlu0 %1916
  %1918 = vrot.lane.b32.xlu0 %v1522, 48
  %v1919 = vpop.permute.xlu0 %1918
  %1920 = vrot.lane.b32.xlu0 %v1523, 48
  %v1921 = vpop.permute.xlu0 %1920
  %1922 = vrot.lane.b32.xlu0 %v1524, 48
  %v1923 = vpop.permute.xlu0 %1922
  %1924 = vrot.lane.b32.xlu0 %v1525, 48
  %v1925 = vpop.permute.xlu0 %1924
  %1958 = vrot.lane.b32.xlu0 %v1526, 56
  %v1959 = vpop.permute.xlu0 %1958
  %1960 = vrot.lane.b32.xlu0 %v1527, 56
  %v1961 = vpop.permute.xlu0 %1960
  %1962 = vrot.lane.b32.xlu0 %v1528, 56
  %v1963 = vpop.permute.xlu0 %1962
  %1964 = vrot.lane.b32.xlu0 %v1529, 56
  %v1965 = vpop.permute.xlu0 %1964
  %1966 = vrot.lane.b32.xlu0 %v1530, 56
  %v1967 = vpop.permute.xlu0 %1966
  %1968 = vrot.lane.b32.xlu0 %v1531, 56
  %v1969 = vpop.permute.xlu0 %1968
  %1970 = vrot.lane.b32.xlu0 %v1532, 56
  %v1971 = vpop.permute.xlu0 %1970
  %1972 = vrot.lane.b32.xlu0 %v1533, 56
  %v1973 = vpop.permute.xlu0 %1972
  %1974 = vrot.lane.b32.xlu0 %v1534, 56
  %v1975 = vpop.permute.xlu0 %1974
  %1976 = vrot.lane.b32.xlu0 %v1535, 56
  %v1977 = vpop.permute.xlu0 %1976
  %1978 = vrot.lane.b32.xlu0 %v1536, 56
  %v1979 = vpop.permute.xlu0 %1978
  %1980 = vrot.lane.b32.xlu0 %v1537, 56
  %v1981 = vpop.permute.xlu0 %1980
  %1982 = vrot.lane.b32.xlu0 %v1538, 56
  %v1983 = vpop.permute.xlu0 %1982
  %1984 = vrot.lane.b32.xlu0 %v1539, 56
  %v1985 = vpop.permute.xlu0 %1984
  %1986 = vrot.lane.b32.xlu0 %v1540, 56
  %v1987 = vpop.permute.xlu0 %1986
  %1988 = vrot.lane.b32.xlu0 %v1541, 56
  %v1989 = vpop.permute.xlu0 %1988
  %2022 = vrot.lane.b32.xlu0 %v1542, 64
  %v2023 = vpop.permute.xlu0 %2022
  %2024 = vrot.lane.b32.xlu0 %v1543, 64
  %v2025 = vpop.permute.xlu0 %2024
  %2026 = vrot.lane.b32.xlu0 %v1544, 64
  %v2027 = vpop.permute.xlu0 %2026
  %2028 = vrot.lane.b32.xlu0 %v1545, 64
  %v2029 = vpop.permute.xlu0 %2028
  %2030 = vrot.lane.b32.xlu0 %v1546, 64
  %v2031 = vpop.permute.xlu0 %2030
  %2032 = vrot.lane.b32.xlu0 %v1547, 64
  %v2033 = vpop.permute.xlu0 %2032
  %2034 = vrot.lane.b32.xlu0 %v1548, 64
  %v2035 = vpop.permute.xlu0 %2034
  %2036 = vrot.lane.b32.xlu0 %v1549, 64
  %v2037 = vpop.permute.xlu0 %2036
  %2038 = vrot.lane.b32.xlu0 %v1550, 64
  %v2039 = vpop.permute.xlu0 %2038
  %2040 = vrot.lane.b32.xlu0 %v1551, 64
  %v2041 = vpop.permute.xlu0 %2040
  %2042 = vrot.lane.b32.xlu0 %v1552, 64
  %v2043 = vpop.permute.xlu0 %2042
  %2044 = vrot.lane.b32.xlu0 %v1553, 64
  %v2045 = vpop.permute.xlu0 %2044
  %2046 = vrot.lane.b32.xlu0 %v1554, 64
  %v2047 = vpop.permute.xlu0 %2046
  %2048 = vrot.lane.b32.xlu0 %v1555, 64
  %v2049 = vpop.permute.xlu0 %2048
  %2050 = vrot.lane.b32.xlu0 %v1556, 64
  %v2051 = vpop.permute.xlu0 %2050
  %2052 = vrot.lane.b32.xlu0 %v1557, 64
  %v2053 = vpop.permute.xlu0 %2052
  %v2070 = vsel %vm886, %v1413, %v1575
  %v2071 = vsel %vm886, %v1414, %v1577
  %v2072 = vsel %vm886, %v1415, %v1579
  %v2073 = vsel %vm886, %v1416, %v1581
  %v2074 = vsel %vm886, %v1417, %v1583
  %v2075 = vsel %vm886, %v1418, %v1585
  %v2076 = vsel %vm886, %v1419, %v1587
  %v2077 = vsel %vm886, %v1420, %v1589
  %v2078 = vsel %vm886, %v1421, %v1591
  %v2079 = vsel %vm886, %v1422, %v1593
  %v2080 = vsel %vm886, %v1423, %v1595
  %v2081 = vsel %vm886, %v1424, %v1597
  %v2082 = vsel %vm886, %v1425, %v1599
  %v2083 = vsel %vm886, %v1426, %v1601
  %v2084 = vsel %vm886, %v1427, %v1603
  %v2085 = vsel %vm886, %v1428, %v1605
  %v2086 = vsel %vm920, %v2070, %v1639
  %v2087 = vsel %vm920, %v2071, %v1641
  %v2088 = vsel %vm920, %v2072, %v1643
  %v2089 = vsel %vm920, %v2073, %v1645
  %v2090 = vsel %vm920, %v2074, %v1647
  %v2091 = vsel %vm920, %v2075, %v1649
  %v2092 = vsel %vm920, %v2076, %v1651
  %v2093 = vsel %vm920, %v2077, %v1653
  %v2094 = vsel %vm920, %v2078, %v1655
  %v2095 = vsel %vm920, %v2079, %v1657
  %v2096 = vsel %vm920, %v2080, %v1659
  %v2097 = vsel %vm920, %v2081, %v1661
  %v2098 = vsel %vm920, %v2082, %v1663
  %v2099 = vsel %vm920, %v2083, %v1665
  %v2100 = vsel %vm920, %v2084, %v1667
  %v2101 = vsel %vm920, %v2085, %v1669
  %v2102 = vsel %vm954, %v2086, %v1703
  %v2103 = vsel %vm954, %v2087, %v1705
  %v2104 = vsel %vm954, %v2088, %v1707
  %v2105 = vsel %vm954, %v2089, %v1709
  %v2106 = vsel %vm954, %v2090, %v1711
  %v2107 = vsel %vm954, %v2091, %v1713
  %v2108 = vsel %vm954, %v2092, %v1715
  %v2109 = vsel %vm954, %v2093, %v1717
  %v2110 = vsel %vm954, %v2094, %v1719
  %v2111 = vsel %vm954, %v2095, %v1721
  %v2112 = vsel %vm954, %v2096, %v1723
  %v2113 = vsel %vm954, %v2097, %v1725
  %v2114 = vsel %vm954, %v2098, %v1727
  %v2115 = vsel %vm954, %v2099, %v1729
  %v2116 = vsel %vm954, %v2100, %v1731
  %v2117 = vsel %vm954, %v2101, %v1733
  %v2118 = vsel %vm988, %v2102, %v1767
  %v2119 = vsel %vm988, %v2103, %v1769
  %v2120 = vsel %vm988, %v2104, %v1771
  %v2121 = vsel %vm988, %v2105, %v1773
  %v2122 = vsel %vm988, %v2106, %v1775
  %v2123 = vsel %vm988, %v2107, %v1777
  %v2124 = vsel %vm988, %v2108, %v1779
  %v2125 = vsel %vm988, %v2109, %v1781
  %v2126 = vsel %vm988, %v2110, %v1783
  %v2127 = vsel %vm988, %v2111, %v1785
  %v2128 = vsel %vm988, %v2112, %v1787
  %v2129 = vsel %vm988, %v2113, %v1789
  %v2130 = vsel %vm988, %v2114, %v1791
  %v2131 = vsel %vm988, %v2115, %v1793
  %v2132 = vsel %vm988, %v2116, %v1795
  %v2133 = vsel %vm988, %v2117, %v1797
  %vm2134 = vcmask 326656
  %v2135 = vsel %vm2134, %v2118, %v1831
  %v2136 = vsel %vm2134, %v2119, %v1833
  %v2137 = vsel %vm2134, %v2120, %v1835
  %v2138 = vsel %vm2134, %v2121, %v1837
  %v2139 = vsel %vm2134, %v2122, %v1839
  %v2140 = vsel %vm2134, %v2123, %v1841
  %v2141 = vsel %vm2134, %v2124, %v1843
  %v2142 = vsel %vm2134, %v2125, %v1845
  %v2143 = vsel %vm2134, %v2126, %v1847
  %v2144 = vsel %vm2134, %v2127, %v1849
  %v2145 = vsel %vm2134, %v2128, %v1851
  %v2146 = vsel %vm2134, %v2129, %v1853
  %v2147 = vsel %vm2134, %v2130, %v1855
  %v2148 = vsel %vm2134, %v2131, %v1857
  %v2149 = vsel %vm2134, %v2132, %v1859
  %v2150 = vsel %vm2134, %v2133, %v1861
  %vm2151 = vcmask 392192
  %v2152 = vsel %vm2151, %v2135, %v1895
  %v2153 = vsel %vm2151, %v2136, %v1897
  %v2154 = vsel %vm2151, %v2137, %v1899
  %v2155 = vsel %vm2151, %v2138, %v1901
  %v2156 = vsel %vm2151, %v2139, %v1903
  %v2157 = vsel %vm2151, %v2140, %v1905
  %v2158 = vsel %vm2151, %v2141, %v1907
  %v2159 = vsel %vm2151, %v2142, %v1909
  %v2160 = vsel %vm2151, %v2143, %v1911
  %v2161 = vsel %vm2151, %v2144, %v1913
  %v2162 = vsel %vm2151, %v2145, %v1915
  %v2163 = vsel %vm2151, %v2146, %v1917
  %v2164 = vsel %vm2151, %v2147, %v1919
  %v2165 = vsel %vm2151, %v2148, %v1921
  %v2166 = vsel %vm2151, %v2149, %v1923
  %v2167 = vsel %vm2151, %v2150, %v1925
  %vm2168 = vcmask 457728
  %v2169 = vsel %vm2168, %v2152, %v1959
  %v2170 = vsel %vm2168, %v2153, %v1961
  %v2171 = vsel %vm2168, %v2154, %v1963
  %v2172 = vsel %vm2168, %v2155, %v1965
  %v2173 = vsel %vm2168, %v2156, %v1967
  %v2174 = vsel %vm2168, %v2157, %v1969
  %v2175 = vsel %vm2168, %v2158, %v1971
  %v2176 = vsel %vm2168, %v2159, %v1973
  %v2177 = vsel %vm2168, %v2160, %v1975
  %v2178 = vsel %vm2168, %v2161, %v1977
  %v2179 = vsel %vm2168, %v2162, %v1979
  %v2180 = vsel %vm2168, %v2163, %v1981
  %v2181 = vsel %vm2168, %v2164, %v1983
  %v2182 = vsel %vm2168, %v2165, %v1985
  %v2183 = vsel %vm2168, %v2166, %v1987
  %v2184 = vsel %vm2168, %v2167, %v1989
  %vm2185 = vcmask 523264
  %v2186 = vsel %vm2185, %v2169, %v2023
  %v2187 = vsel %vm2185, %v2170, %v2025
  %v2188 = vsel %vm2185, %v2171, %v2027
  %v2189 = vsel %vm2185, %v2172, %v2029
  %v2190 = vsel %vm2185, %v2173, %v2031
  %v2191 = vsel %vm2185, %v2174, %v2033
  %v2192 = vsel %vm2185, %v2175, %v2035
  %v2193 = vsel %vm2185, %v2176, %v2037
  %v2194 = vsel %vm2185, %v2177, %v2039
  %v2195 = vsel %vm2185, %v2178, %v2041
  %v2196 = vsel %vm2185, %v2179, %v2043
  %v2197 = vsel %vm2185, %v2180, %v2045
  %v2198 = vsel %vm2185, %v2181, %v2047
  %v2199 = vsel %vm2185, %v2182, %v2049
  %v2200 = vsel %vm2185, %v2183, %v2051
  %v2201 = vsel %vm2185, %v2184, %v2053
  %v2202 = vpack.c.bf16 %v2187, %v2186
  %v2203 = vpack.c.bf16 %v2189, %v2188
  %v2204 = vpack.c.bf16 %v2191, %v2190
  %v2205 = vpack.c.bf16 %v2193, %v2192
  %v2206 = vpack.c.bf16 %v2195, %v2194
  %v2207 = vpack.c.bf16 %v2197, %v2196
  %v2208 = vpack.c.bf16 %v2199, %v2198
  %v2209 = vpack.c.bf16 %v2201, %v2200
  %v2210 = vld [vmem:[%s5] sm:$0xf]
  %v2211 = vld [vmem:[%s5 + $0x4] sm:$0xf]
  %v2212 = vld [vmem:[%s5 + $0x8] sm:$0xf]
  %v2213 = vld [vmem:[%s5 + $0xc] sm:$0xf]
  %v2214 = vld [vmem:[%s5 + $0x10] sm:$0xf]
  %v2215 = vld [vmem:[%s5 + $0x14] sm:$0xf]
  %v2216 = vld [vmem:[%s5 + $0x18] sm:$0xf]
  %v2217 = vld [vmem:[%s5 + $0x1c] sm:$0xf]
  %v2218 = vld [vmem:[%s5 + $0x20] sm:$0xf]
  %v2219 = vld [vmem:[%s6] sm:$0x1]
  %v2221 = vlaneseq
  %v2222 = vshrl.u32 %v2221, 7
  %v2223 = vsub.s32 0, %v2222
  %v2224 = vrot.slane %v2219, %v2223
  %v2235 = vunpack.c.l.b16 %v2210
  %v2236 = vunpack.c.l.b16 %v2211
  %v2237 = vunpack.c.l.b16 %v2212
  %v2238 = vunpack.c.l.b16 %v2213
  %v2239 = vunpack.c.l.b16 %v2214
  %v2240 = vunpack.c.l.b16 %v2215
  %v2241 = vunpack.c.l.b16 %v2216
  %v2242 = vunpack.c.l.b16 %v2217
  %v2243 = vunpack.c.l.b16 %v2218
  %v2244 = vpack.c.b16 %v2236, %v2235
  %v2245 = vpack.c.b16 %v2238, %v2237
  %v2246 = vpack.c.b16 %v2240, %v2239
  %v2247 = vpack.c.b16 %v2242, %v2241
  %v2248 = vpack.c.b16 %v2243, %v2243
  %vm2253 = vcmask 588800
  %v2255 = vsel %vm2253, %v2202, 0
  %v2258 = vsel %vm2253, %v2203, 0
  %v2261 = vsel %vm2253, %v2204, 0
  %v2264 = vsel %vm2253, %v2205, 0
  %v2267 = vsel %vm2253, %v2206, 0
  %v2270 = vsel %vm2253, %v2207, 0
  %v2273 = vsel %vm2253, %v2208, 0
  %v2276 = vsel %vm2253, %v2209, 0
  %vm2278 = vcmask 1043456
  %v2280 = vsel %vm2278, %v2248, 0
  %2282 = vmatprep.subr.bf16.mxu0 0
  %2283 = vmatpush1.bf16.msra.mxu0 %v2244
  %2284 = vmatprep.subr.bf16.mxu0 0
  %2285 = vmatpush1.bf16.msra.mxu0 %v2245
  %2286 = vmatprep.subr.bf16.mxu0 0
  %2287 = vmatpush1.bf16.msra.mxu0 %v2246
  %2288 = vmatprep.subr.bf16.mxu0 0
  %2289 = vmatpush1.bf16.msra.mxu0 %v2247
  %2290 = vmatprep.subr.bf16.mxu0 0
  %2291 = vmatpush1.bf16.msra.mxu0 %v2280
  %2292 = vmatprep.subr.bf16.mxu0 0
  %2293 = vmatpush1.bf16.msra.mxu0 0
  %2294 = vmatprep.subr.bf16.mxu0 0
  %2295 = vmatpush1.bf16.msra.mxu0 0
  %2296 = vmatprep.subr.bf16.mxu0 0
  %2297 = vmatpush1.bf16.msra.mxu0 0
  %2298 = vmatprep.subr.bf16.mxu0 0
  %2299 = vmatpush1.bf16.msra.mxu0 0
  %2300 = vmatprep.subr.bf16.mxu0 0
  %2301 = vmatpush1.bf16.msra.mxu0 0
  %2302 = vmatprep.subr.bf16.mxu0 0
  %2303 = vmatpush1.bf16.msra.mxu0 0
  %2304 = vmatprep.subr.bf16.mxu0 0
  %2305 = vmatpush1.bf16.msra.mxu0 0
  %2306 = vmatprep.subr.bf16.mxu0 0
  %2307 = vmatpush1.bf16.msra.mxu0 0
  %2308 = vmatprep.subr.bf16.mxu0 0
  %2309 = vmatpush1.bf16.msra.mxu0 0
  %2310 = vmatprep.subr.bf16.mxu0 0
  %2311 = vmatpush1.bf16.msra.mxu0 0
  %2312 = vmatprep.subr.bf16.mxu0 0
  %2313 = vmatpush1.bf16.msra.mxu0 0
  %2314 = vmatprep.mubr.bf16.mxu0 0
  %2315 = vmatmul.mubr.bf16.gmra.mrb[0].mxu0 %v2255
  %v2316 = vpop.f32.mrb[0].mxu0
  %v2317 = vadd.f32 %v2224, %v2316
  %v2318 = vpop.f32.mrb[0].mxu0
  %v2319 = vpop.f32.mrb[0].mxu0
  %v2320 = vadd.f32 %v2224, %v2319
  %v2321 = vpop.f32.mrb[0].mxu0
  %2322 = vmatprep.mubr.bf16.mxu0 0
  %2323 = vmatmul.mubr.bf16.gmra.mrb[0].mxu0 %v2258
  %v2324 = vpop.f32.mrb[0].mxu0
  %v2325 = vadd.f32 %v2224, %v2324
  %v2326 = vpop.f32.mrb[0].mxu0
  %v2327 = vpop.f32.mrb[0].mxu0
  %v2328 = vadd.f32 %v2224, %v2327
  %v2329 = vpop.f32.mrb[0].mxu0
  %2330 = vmatprep.mubr.bf16.mxu0 0
  %2331 = vmatmul.mubr.bf16.gmra.mrb[0].mxu0 %v2261
  %v2332 = vpop.f32.mrb[0].mxu0
  %v2333 = vadd.f32 %v2224, %v2332
  %v2334 = vpop.f32.mrb[0].mxu0
  %v2335 = vpop.f32.mrb[0].mxu0
  %v2336 = vadd.f32 %v2224, %v2335
  %v2337 = vpop.f32.mrb[0].mxu0
  %2338 = vmatprep.mubr.bf16.mxu0 0
  %2339 = vmatmul.mubr.bf16.gmra.mrb[0].mxu0 %v2264
  %v2340 = vpop.f32.mrb[0].mxu0
  %v2341 = vadd.f32 %v2224, %v2340
  %v2342 = vpop.f32.mrb[0].mxu0
  %v2343 = vpop.f32.mrb[0].mxu0
  %v2344 = vadd.f32 %v2224, %v2343
  %v2345 = vpop.f32.mrb[0].mxu0
  %2346 = vmatprep.mubr.bf16.mxu0 0
  %2347 = vmatmul.mubr.bf16.gmra.mrb[0].mxu0 %v2267
  %v2348 = vpop.f32.mrb[0].mxu0
  %v2349 = vadd.f32 %v2224, %v2348
  %v2350 = vpop.f32.mrb[0].mxu0
  %v2351 = vpop.f32.mrb[0].mxu0
  %v2352 = vadd.f32 %v2224, %v2351
  %v2353 = vpop.f32.mrb[0].mxu0
  %2354 = vmatprep.mubr.bf16.mxu0 0
  %2355 = vmatmul.mubr.bf16.gmra.mrb[0].mxu0 %v2270
  %v2356 = vpop.f32.mrb[0].mxu0
  %v2357 = vadd.f32 %v2224, %v2356
  %v2358 = vpop.f32.mrb[0].mxu0
  %v2359 = vpop.f32.mrb[0].mxu0
  %v2360 = vadd.f32 %v2224, %v2359
  %v2361 = vpop.f32.mrb[0].mxu0
  %2362 = vmatprep.mubr.bf16.mxu0 0
  %2363 = vmatmul.mubr.bf16.gmra.mrb[0].mxu0 %v2273
  %v2364 = vpop.f32.mrb[0].mxu0
  %v2365 = vadd.f32 %v2224, %v2364
  %v2366 = vpop.f32.mrb[0].mxu0
  %v2367 = vpop.f32.mrb[0].mxu0
  %v2368 = vadd.f32 %v2224, %v2367
  %v2369 = vpop.f32.mrb[0].mxu0
  %2370 = vmatprep.mubr.bf16.mxu0 0
  %2371 = vmatmul.mubr.bf16.gmra.mrb[0].mxu0 %v2276
  %v2372 = vpop.f32.mrb[0].mxu0
  %v2373 = vadd.f32 %v2224, %v2372
  %v2374 = vpop.f32.mrb[0].mxu0
  %v2375 = vpop.f32.mrb[0].mxu0
  %v2376 = vadd.f32 %v2224, %v2375
  %v2377 = vpop.f32.mrb[0].mxu0
  %2378 = vdwg.mxu0
  %v2379 = vsel %vm886, %v2317, 0.0
  %v2380 = vsel %vm886, %v2320, 0.0
  %v2381 = vadd.f32 %v2379, %v2380
  %v2382 = vsel %vm886, %v2325, 0.0
  %v2383 = vadd.f32 %v2381, %v2382
  %v2384 = vsel %vm886, %v2328, 0.0
  %v2385 = vadd.f32 %v2383, %v2384
  %v2386 = vsel %vm886, %v2333, 0.0
  %v2387 = vadd.f32 %v2385, %v2386
  %v2388 = vsel %vm886, %v2336, 0.0
  %v2389 = vadd.f32 %v2387, %v2388
  %v2390 = vsel %vm886, %v2341, 0.0
  %v2391 = vadd.f32 %v2389, %v2390
  %v2392 = vsel %vm886, %v2344, 0.0
  %v2393 = vadd.f32 %v2391, %v2392
  %v2394 = vsel %vm886, %v2349, 0.0
  %v2395 = vadd.f32 %v2393, %v2394
  %v2396 = vsel %vm886, %v2352, 0.0
  %v2397 = vadd.f32 %v2395, %v2396
  %v2398 = vsel %vm886, %v2357, 0.0
  %v2399 = vadd.f32 %v2397, %v2398
  %v2400 = vsel %vm886, %v2360, 0.0
  %v2401 = vadd.f32 %v2399, %v2400
  %v2402 = vsel %vm886, %v2365, 0.0
  %v2403 = vadd.f32 %v2401, %v2402
  %v2404 = vsel %vm886, %v2368, 0.0
  %v2405 = vadd.f32 %v2403, %v2404
  %v2406 = vsel %vm886, %v2373, 0.0
  %v2407 = vadd.f32 %v2405, %v2406
  %v2408 = vsel %vm886, %v2376, 0.0
  %v2409 = vadd.f32 %v2407, %v2408
  %v2410 = vrot.slane %v2409, 4
  %v2411 = vadd.f32 %v2409, %v2410
  %v2412 = vrot.slane %v2411, 2
  %v2413 = vadd.f32 %v2411, %v2412
  %v2414 = vrot.slane %v2413, 1
  %v2415 = vadd.f32 %v2413, %v2414
  %v2416 = vmul.f32 %v2415, %v1203
  %v2417 = vsub.f32 %v2317, %v2416
  %v2418 = vsub.f32 %v2320, %v2416
  %v2419 = vsub.f32 %v2325, %v2416
  %v2420 = vsub.f32 %v2328, %v2416
  %v2421 = vsub.f32 %v2333, %v2416
  %v2422 = vsub.f32 %v2336, %v2416
  %v2423 = vsub.f32 %v2341, %v2416
  %v2424 = vsub.f32 %v2344, %v2416
  %v2425 = vsub.f32 %v2349, %v2416
  %v2426 = vsub.f32 %v2352, %v2416
  %v2427 = vsub.f32 %v2357, %v2416
  %v2428 = vsub.f32 %v2360, %v2416
  %v2429 = vsub.f32 %v2365, %v2416
  %v2430 = vsub.f32 %v2368, %v2416
  %v2431 = vsub.f32 %v2373, %v2416
  %v2432 = vsub.f32 %v2376, %v2416
  %v2433 = vmul.f32 %v2417, %v2417
  %v2434 = vmul.f32 %v2418, %v2418
  %v2435 = vmul.f32 %v2419, %v2419
  %v2436 = vmul.f32 %v2420, %v2420
  %v2437 = vmul.f32 %v2421, %v2421
  %v2438 = vmul.f32 %v2422, %v2422
  %v2439 = vmul.f32 %v2423, %v2423
  %v2440 = vmul.f32 %v2424, %v2424
  %v2441 = vmul.f32 %v2425, %v2425
  %v2442 = vmul.f32 %v2426, %v2426
  %v2443 = vmul.f32 %v2427, %v2427
  %v2444 = vmul.f32 %v2428, %v2428
  %v2445 = vmul.f32 %v2429, %v2429
  %v2446 = vmul.f32 %v2430, %v2430
  %v2447 = vmul.f32 %v2431, %v2431
  %v2448 = vmul.f32 %v2432, %v2432
  %v2449 = vsel %vm886, %v2433, 0.0
  %v2450 = vsel %vm886, %v2434, 0.0
  %v2451 = vadd.f32 %v2449, %v2450
  %v2452 = vsel %vm886, %v2435, 0.0
  %v2453 = vadd.f32 %v2451, %v2452
  %v2454 = vsel %vm886, %v2436, 0.0
  %v2455 = vadd.f32 %v2453, %v2454
  %v2456 = vsel %vm886, %v2437, 0.0
  %v2457 = vadd.f32 %v2455, %v2456
  %v2458 = vsel %vm886, %v2438, 0.0
  %v2459 = vadd.f32 %v2457, %v2458
  %v2460 = vsel %vm886, %v2439, 0.0
  %v2461 = vadd.f32 %v2459, %v2460
  %v2462 = vsel %vm886, %v2440, 0.0
  %v2463 = vadd.f32 %v2461, %v2462
  %v2464 = vsel %vm886, %v2441, 0.0
  %v2465 = vadd.f32 %v2463, %v2464
  %v2466 = vsel %vm886, %v2442, 0.0
  %v2467 = vadd.f32 %v2465, %v2466
  %v2468 = vsel %vm886, %v2443, 0.0
  %v2469 = vadd.f32 %v2467, %v2468
  %v2470 = vsel %vm886, %v2444, 0.0
  %v2471 = vadd.f32 %v2469, %v2470
  %v2472 = vsel %vm886, %v2445, 0.0
  %v2473 = vadd.f32 %v2471, %v2472
  %v2474 = vsel %vm886, %v2446, 0.0
  %v2475 = vadd.f32 %v2473, %v2474
  %v2476 = vsel %vm886, %v2447, 0.0
  %v2477 = vadd.f32 %v2475, %v2476
  %v2478 = vsel %vm886, %v2448, 0.0
  %v2479 = vadd.f32 %v2477, %v2478
  %v2480 = vrot.slane %v2479, 4
  %v2481 = vadd.f32 %v2479, %v2480
  %v2482 = vrot.slane %v2481, 2
  %v2483 = vadd.f32 %v2481, %v2482
  %v2484 = vrot.slane %v2483, 1
  %v2485 = vadd.f32 %v2483, %v2484
  %v2486 = vmul.f32 %v2485, %v1203
  %v2487 = vadd.f32 %v2486, 1e-05
  %v2488 = vrsqrt.pop %v2487
  %v2489 = vmul.f32 %v2417, %v2488
  %v2490 = vmul.f32 %v2418, %v2488
  %v2491 = vmul.f32 %v2419, %v2488
  %v2492 = vmul.f32 %v2420, %v2488
  %v2493 = vmul.f32 %v2421, %v2488
  %v2494 = vmul.f32 %v2422, %v2488
  %v2495 = vmul.f32 %v2423, %v2488
  %v2496 = vmul.f32 %v2424, %v2488
  %v2497 = vmul.f32 %v2425, %v2488
  %v2498 = vmul.f32 %v2426, %v2488
  %v2499 = vmul.f32 %v2427, %v2488
  %v2500 = vmul.f32 %v2428, %v2488
  %v2501 = vmul.f32 %v2429, %v2488
  %v2502 = vmul.f32 %v2430, %v2488
  %v2503 = vmul.f32 %v2431, %v2488
  %v2504 = vmul.f32 %v2432, %v2488
  %v2505 = vld [vmem:[%s7] sm:$0x1]
  %v2507 = vlaneseq
  %v2508 = vshrl.u32 %v2507, 7
  %v2509 = vsub.s32 0, %v2508
  %v2510 = vrot.slane %v2505, %v2509
  %v2512 = vmul.f32 %v2489, %v2510
  %v2513 = vmul.f32 %v2490, %v2510
  %v2514 = vmul.f32 %v2491, %v2510
  %v2515 = vmul.f32 %v2492, %v2510
  %v2516 = vmul.f32 %v2493, %v2510
  %v2517 = vmul.f32 %v2494, %v2510
  %v2518 = vmul.f32 %v2495, %v2510
  %v2519 = vmul.f32 %v2496, %v2510
  %v2520 = vmul.f32 %v2497, %v2510
  %v2521 = vmul.f32 %v2498, %v2510
  %v2522 = vmul.f32 %v2499, %v2510
  %v2523 = vmul.f32 %v2500, %v2510
  %v2524 = vmul.f32 %v2501, %v2510
  %v2525 = vmul.f32 %v2502, %v2510
  %v2526 = vmul.f32 %v2503, %v2510
  %v2527 = vmul.f32 %v2504, %v2510
  %v2528 = vld [vmem:[%s8] sm:$0x1]
  %v2530 = vlaneseq
  %v2531 = vshrl.u32 %v2530, 7
  %v2532 = vsub.s32 0, %v2531
  %v2533 = vrot.slane %v2528, %v2532
  %v2535 = vadd.f32 %v2512, %v2533
  %v2536 = vadd.f32 %v2513, %v2533
  %v2537 = vadd.f32 %v2514, %v2533
  %v2538 = vadd.f32 %v2515, %v2533
  %v2539 = vadd.f32 %v2516, %v2533
  %v2540 = vadd.f32 %v2517, %v2533
  %v2541 = vadd.f32 %v2518, %v2533
  %v2542 = vadd.f32 %v2519, %v2533
  %v2543 = vadd.f32 %v2520, %v2533
  %v2544 = vadd.f32 %v2521, %v2533
  %v2545 = vadd.f32 %v2522, %v2533
  %v2546 = vadd.f32 %v2523, %v2533
  %v2547 = vadd.f32 %v2524, %v2533
  %v2548 = vadd.f32 %v2525, %v2533
  %v2549 = vadd.f32 %v2526, %v2533
  %v2550 = vadd.f32 %v2527, %v2533
  %v2551 = vmax.f32 %v2535, 0.0
  %v2552 = vmax.f32 %v2536, 0.0
  %v2553 = vmax.f32 %v2537, 0.0
  %v2554 = vmax.f32 %v2538, 0.0
  %v2555 = vmax.f32 %v2539, 0.0
  %v2556 = vmax.f32 %v2540, 0.0
  %v2557 = vmax.f32 %v2541, 0.0
  %v2558 = vmax.f32 %v2542, 0.0
  %v2559 = vmax.f32 %v2543, 0.0
  %v2560 = vmax.f32 %v2544, 0.0
  %v2561 = vmax.f32 %v2545, 0.0
  %v2562 = vmax.f32 %v2546, 0.0
  %v2563 = vmax.f32 %v2547, 0.0
  %v2564 = vmax.f32 %v2548, 0.0
  %v2565 = vmax.f32 %v2549, 0.0
  %v2566 = vmax.f32 %v2550, 0.0
  %v2567 = vpack.c.bf16 %v2552, %v2551
  %v2568 = vpack.c.bf16 %v2554, %v2553
  %v2569 = vpack.c.bf16 %v2556, %v2555
  %v2570 = vpack.c.bf16 %v2558, %v2557
  %v2571 = vpack.c.bf16 %v2560, %v2559
  %v2572 = vpack.c.bf16 %v2562, %v2561
  %v2573 = vpack.c.bf16 %v2564, %v2563
  %v2574 = vpack.c.bf16 %v2566, %v2565
  %v2575 = vld [vmem:[%s9] sm:$0xf]
  %v2576 = vld [vmem:[%s10] sm:$0x1]
  %v2578 = vlaneseq
  %v2579 = vshrl.u32 %v2578, 7
  %v2580 = vsub.s32 0, %v2579
  %v2581 = vrot.slane %v2576, %v2580
  %v2584 = vsel %vm886, %v2567, 0
  %v2587 = vsel %vm886, %v2568, 0
  %v2590 = vsel %vm886, %v2569, 0
  %v2593 = vsel %vm886, %v2570, 0
  %v2596 = vsel %vm886, %v2571, 0
  %v2599 = vsel %vm886, %v2572, 0
  %v2602 = vsel %vm886, %v2573, 0
  %v2605 = vsel %vm886, %v2574, 0
  %v2608 = vsel %vm2278, %v2575, 0
  %2610 = vmatprep.subr.bf16.mxu0 0
  %2611 = vmatpush1.bf16.msra.mxu0 %v2608
  %2612 = vmatprep.subr.bf16.mxu0 0
  %2613 = vmatpush1.bf16.msra.mxu0 0
  %2614 = vmatprep.subr.bf16.mxu0 0
  %2615 = vmatpush1.bf16.msra.mxu0 0
  %2616 = vmatprep.subr.bf16.mxu0 0
  %2617 = vmatpush1.bf16.msra.mxu0 0
  %2618 = vmatprep.subr.bf16.mxu0 0
  %2619 = vmatpush1.bf16.msra.mxu0 0
  %2620 = vmatprep.subr.bf16.mxu0 0
  %2621 = vmatpush1.bf16.msra.mxu0 0
  %2622 = vmatprep.subr.bf16.mxu0 0
  %2623 = vmatpush1.bf16.msra.mxu0 0
  %2624 = vmatprep.subr.bf16.mxu0 0
  %2625 = vmatpush1.bf16.msra.mxu0 0
  %2626 = vmatprep.subr.bf16.mxu0 0
  %2627 = vmatpush1.bf16.msra.mxu0 0
  %2628 = vmatprep.subr.bf16.mxu0 0
  %2629 = vmatpush1.bf16.msra.mxu0 0
  %2630 = vmatprep.subr.bf16.mxu0 0
  %2631 = vmatpush1.bf16.msra.mxu0 0
  %2632 = vmatprep.subr.bf16.mxu0 0
  %2633 = vmatpush1.bf16.msra.mxu0 0
  %2634 = vmatprep.subr.bf16.mxu0 0
  %2635 = vmatpush1.bf16.msra.mxu0 0
  %2636 = vmatprep.subr.bf16.mxu0 0
  %2637 = vmatpush1.bf16.msra.mxu0 0
  %2638 = vmatprep.subr.bf16.mxu0 0
  %2639 = vmatpush1.bf16.msra.mxu0 0
  %2640 = vmatprep.subr.bf16.mxu0 0
  %2641 = vmatpush1.bf16.msra.mxu0 0
  %2642 = vmatprep.mubr.bf16.mxu0 0
  %2643 = vmatmul.mubr.bf16.gmra.mrb[0].mxu0 %v2584
  %v2644 = vpop.f32.mrb[0].mxu0
  %v2645 = vadd.f32 %v2581, %v2644
  %v2646 = vpop.f32.mrb[0].mxu0
  %v2647 = vpop.f32.mrb[0].mxu0
  %v2648 = vadd.f32 %v2581, %v2647
  %v2649 = vpop.f32.mrb[0].mxu0
  %2650 = vmatprep.mubr.bf16.mxu0 0
  %2651 = vmatmul.mubr.bf16.gmra.mrb[0].mxu0 %v2587
  %v2652 = vpop.f32.mrb[0].mxu0
  %v2653 = vadd.f32 %v2581, %v2652
  %v2654 = vpop.f32.mrb[0].mxu0
  %v2655 = vpop.f32.mrb[0].mxu0
  %v2656 = vadd.f32 %v2581, %v2655
  %v2657 = vpop.f32.mrb[0].mxu0
  %2658 = vmatprep.mubr.bf16.mxu0 0
  %2659 = vmatmul.mubr.bf16.gmra.mrb[0].mxu0 %v2590
  %v2660 = vpop.f32.mrb[0].mxu0
  %v2661 = vadd.f32 %v2581, %v2660
  %v2662 = vpop.f32.mrb[0].mxu0
  %v2663 = vpop.f32.mrb[0].mxu0
  %v2664 = vadd.f32 %v2581, %v2663
  %v2665 = vpop.f32.mrb[0].mxu0
  %2666 = vmatprep.mubr.bf16.mxu0 0
  %2667 = vmatmul.mubr.bf16.gmra.mrb[0].mxu0 %v2593
  %v2668 = vpop.f32.mrb[0].mxu0
  %v2669 = vadd.f32 %v2581, %v2668
  %v2670 = vpop.f32.mrb[0].mxu0
  %v2671 = vpop.f32.mrb[0].mxu0
  %v2672 = vadd.f32 %v2581, %v2671
  %v2673 = vpop.f32.mrb[0].mxu0
  %2674 = vmatprep.mubr.bf16.mxu0 0
  %2675 = vmatmul.mubr.bf16.gmra.mrb[0].mxu0 %v2596
  %v2676 = vpop.f32.mrb[0].mxu0
  %v2677 = vadd.f32 %v2581, %v2676
  %v2678 = vpop.f32.mrb[0].mxu0
  %v2679 = vpop.f32.mrb[0].mxu0
  %v2680 = vadd.f32 %v2581, %v2679
  %v2681 = vpop.f32.mrb[0].mxu0
  %2682 = vmatprep.mubr.bf16.mxu0 0
  %2683 = vmatmul.mubr.bf16.gmra.mrb[0].mxu0 %v2599
  %v2684 = vpop.f32.mrb[0].mxu0
  %v2685 = vadd.f32 %v2581, %v2684
  %v2686 = vpop.f32.mrb[0].mxu0
  %v2687 = vpop.f32.mrb[0].mxu0
  %v2688 = vadd.f32 %v2581, %v2687
  %v2689 = vpop.f32.mrb[0].mxu0
  %2690 = vmatprep.mubr.bf16.mxu0 0
  %2691 = vmatmul.mubr.bf16.gmra.mrb[0].mxu0 %v2602
  %v2692 = vpop.f32.mrb[0].mxu0
  %v2693 = vadd.f32 %v2581, %v2692
  %v2694 = vpop.f32.mrb[0].mxu0
  %v2695 = vpop.f32.mrb[0].mxu0
  %v2696 = vadd.f32 %v2581, %v2695
  %v2697 = vpop.f32.mrb[0].mxu0
  %2698 = vmatprep.mubr.bf16.mxu0 0
  %2699 = vmatmul.mubr.bf16.gmra.mrb[0].mxu0 %v2605
  %v2700 = vpop.f32.mrb[0].mxu0
  %v2701 = vadd.f32 %v2581, %v2700
  %v2702 = vpop.f32.mrb[0].mxu0
  %v2703 = vpop.f32.mrb[0].mxu0
  %v2704 = vadd.f32 %v2581, %v2703
  %v2705 = vpop.f32.mrb[0].mxu0
  %2706 = vdwg.mxu0
  %v2723 = vrot.slane %v2648, 7
  %vm2724 = vcmask 1041409
  %v2725 = vsel %vm2724, %v2723, %v2645
  %v2726 = vrot.slane %v2653, 6
  %vm2727 = vcmask 1042434
  %v2728 = vsel %vm2727, %v2726, %v2725
  %v2729 = vrot.slane %v2656, 5
  %vm2730 = vcmask 1043459
  %v2731 = vsel %vm2730, %v2729, %v2728
  %v2732 = vrot.slane %v2661, 4
  %vm2733 = vcmask 1044484
  %v2734 = vsel %vm2733, %v2732, %v2731
  %v2735 = vrot.slane %v2664, 3
  %vm2736 = vcmask 1045509
  %v2737 = vsel %vm2736, %v2735, %v2734
  %v2738 = vrot.slane %v2669, 2
  %vm2739 = vcmask 1046534
  %v2740 = vsel %vm2739, %v2738, %v2737
  %v2741 = vrot.slane %v2672, 1
  %vm2742 = vcmask 1047559
  %v2743 = vsel %vm2742, %v2741, %v2740
  %v2744 = vrot.slane %v2680, 7
  %v2745 = vsel %vm2724, %v2744, %v2677
  %v2746 = vrot.slane %v2685, 6
  %v2747 = vsel %vm2727, %v2746, %v2745
  %v2748 = vrot.slane %v2688, 5
  %v2749 = vsel %vm2730, %v2748, %v2747
  %v2750 = vrot.slane %v2693, 4
  %v2751 = vsel %vm2733, %v2750, %v2749
  %v2752 = vrot.slane %v2696, 3
  %v2753 = vsel %vm2736, %v2752, %v2751
  %v2754 = vrot.slane %v2701, 2
  %v2755 = vsel %vm2739, %v2754, %v2753
  %v2756 = vrot.slane %v2704, 1
  %v2757 = vsel %vm2742, %v2756, %v2755
  %v2760 = vrot.slane %v2645, 1
  %v2761 = vsel %vm2724, %v2648, %v2760
  %v2762 = vrot.slane %v2653, 7
  %v2763 = vsel %vm2727, %v2762, %v2761
  %v2764 = vrot.slane %v2656, 6
  %v2765 = vsel %vm2730, %v2764, %v2763
  %v2766 = vrot.slane %v2661, 5
  %v2767 = vsel %vm2733, %v2766, %v2765
  %v2768 = vrot.slane %v2664, 4
  %v2769 = vsel %vm2736, %v2768, %v2767
  %v2770 = vrot.slane %v2669, 3
  %v2771 = vsel %vm2739, %v2770, %v2769
  %v2772 = vrot.slane %v2672, 2
  %v2773 = vsel %vm2742, %v2772, %v2771
  %v2774 = vrot.slane %v2677, 1
  %v2775 = vsel %vm2724, %v2680, %v2774
  %v2776 = vrot.slane %v2685, 7
  %v2777 = vsel %vm2727, %v2776, %v2775
  %v2778 = vrot.slane %v2688, 6
  %v2779 = vsel %vm2730, %v2778, %v2777
  %v2780 = vrot.slane %v2693, 5
  %v2781 = vsel %vm2733, %v2780, %v2779
  %v2782 = vrot.slane %v2696, 4
  %v2783 = vsel %vm2736, %v2782, %v2781
  %v2784 = vrot.slane %v2701, 3
  %v2785 = vsel %vm2739, %v2784, %v2783
  %v2786 = vrot.slane %v2704, 2
  %v2787 = vsel %vm2742, %v2786, %v2785
  %2788 = vrot.lane.b32.xlu0 %v2773, 16
  %v2789 = vpop.permute.xlu0 %2788
  %2790 = vrot.lane.b32.xlu0 %v2787, 16
  %v2791 = vpop.permute.xlu0 %2790
  %v2794 = vrot.slane %v2645, 2
  %v2795 = vrot.slane %v2648, 1
  %v2796 = vsel %vm2724, %v2795, %v2794
  %v2797 = vsel %vm2727, %v2653, %v2796
  %v2798 = vrot.slane %v2656, 7
  %v2799 = vsel %vm2730, %v2798, %v2797
  %v2800 = vrot.slane %v2661, 6
  %v2801 = vsel %vm2733, %v2800, %v2799
  %v2802 = vrot.slane %v2664, 5
  %v2803 = vsel %vm2736, %v2802, %v2801
  %v2804 = vrot.slane %v2669, 4
  %v2805 = vsel %vm2739, %v2804, %v2803
  %v2806 = vrot.slane %v2672, 3
  %v2807 = vsel %vm2742, %v2806, %v2805
  %v2808 = vrot.slane %v2677, 2
  %v2809 = vrot.slane %v2680, 1
  %v2810 = vsel %vm2724, %v2809, %v2808
  %v2811 = vsel %vm2727, %v2685, %v2810
  %v2812 = vrot.slane %v2688, 7
  %v2813 = vsel %vm2730, %v2812, %v2811
  %v2814 = vrot.slane %v2693, 6
  %v2815 = vsel %vm2733, %v2814, %v2813
  %v2816 = vrot.slane %v2696, 5
  %v2817 = vsel %vm2736, %v2816, %v2815
  %v2818 = vrot.slane %v2701, 4
  %v2819 = vsel %vm2739, %v2818, %v2817
  %v2820 = vrot.slane %v2704, 3
  %v2821 = vsel %vm2742, %v2820, %v2819
  %2822 = vrot.lane.b32.xlu0 %v2807, 32
  %v2823 = vpop.permute.xlu0 %2822
  %2824 = vrot.lane.b32.xlu0 %v2821, 32
  %v2825 = vpop.permute.xlu0 %2824
  %v2828 = vrot.slane %v2645, 3
  %v2829 = vrot.slane %v2648, 2
  %v2830 = vsel %vm2724, %v2829, %v2828
  %v2831 = vrot.slane %v2653, 1
  %v2832 = vsel %vm2727, %v2831, %v2830
  %v2833 = vsel %vm2730, %v2656, %v2832
  %v2834 = vrot.slane %v2661, 7
  %v2835 = vsel %vm2733, %v2834, %v2833
  %v2836 = vrot.slane %v2664, 6
  %v2837 = vsel %vm2736, %v2836, %v2835
  %v2838 = vrot.slane %v2669, 5
  %v2839 = vsel %vm2739, %v2838, %v2837
  %v2840 = vrot.slane %v2672, 4
  %v2841 = vsel %vm2742, %v2840, %v2839
  %v2842 = vrot.slane %v2677, 3
  %v2843 = vrot.slane %v2680, 2
  %v2844 = vsel %vm2724, %v2843, %v2842
  %v2845 = vrot.slane %v2685, 1
  %v2846 = vsel %vm2727, %v2845, %v2844
  %v2847 = vsel %vm2730, %v2688, %v2846
  %v2848 = vrot.slane %v2693, 7
  %v2849 = vsel %vm2733, %v2848, %v2847
  %v2850 = vrot.slane %v2696, 6
  %v2851 = vsel %vm2736, %v2850, %v2849
  %v2852 = vrot.slane %v2701, 5
  %v2853 = vsel %vm2739, %v2852, %v2851
  %v2854 = vrot.slane %v2704, 4
  %v2855 = vsel %vm2742, %v2854, %v2853
  %2856 = vrot.lane.b32.xlu0 %v2841, 48
  %v2857 = vpop.permute.xlu0 %2856
  %2858 = vrot.lane.b32.xlu0 %v2855, 48
  %v2859 = vpop.permute.xlu0 %2858
  %v2862 = vrot.slane %v2645, 4
  %v2863 = vrot.slane %v2648, 3
  %v2864 = vsel %vm2724, %v2863, %v2862
  %v2865 = vrot.slane %v2653, 2
  %v2866 = vsel %vm2727, %v2865, %v2864
  %v2867 = vrot.slane %v2656, 1
  %v2868 = vsel %vm2730, %v2867, %v2866
  %v2869 = vsel %vm2733, %v2661, %v2868
  %v2870 = vrot.slane %v2664, 7
  %v2871 = vsel %vm2736, %v2870, %v2869
  %v2872 = vrot.slane %v2669, 6
  %v2873 = vsel %vm2739, %v2872, %v2871
  %v2874 = vrot.slane %v2672, 5
  %v2875 = vsel %vm2742, %v2874, %v2873
  %v2876 = vrot.slane %v2677, 4
  %v2877 = vrot.slane %v2680, 3
  %v2878 = vsel %vm2724, %v2877, %v2876
  %v2879 = vrot.slane %v2685, 2
  %v2880 = vsel %vm2727, %v2879, %v2878
  %v2881 = vrot.slane %v2688, 1
  %v2882 = vsel %vm2730, %v2881, %v2880
  %v2883 = vsel %vm2733, %v2693, %v2882
  %v2884 = vrot.slane %v2696, 7
  %v2885 = vsel %vm2736, %v2884, %v2883
  %v2886 = vrot.slane %v2701, 6
  %v2887 = vsel %vm2739, %v2886, %v2885
  %v2888 = vrot.slane %v2704, 5
  %v2889 = vsel %vm2742, %v2888, %v2887
  %2890 = vrot.lane.b32.xlu0 %v2875, 64
  %v2891 = vpop.permute.xlu0 %2890
  %2892 = vrot.lane.b32.xlu0 %v2889, 64
  %v2893 = vpop.permute.xlu0 %2892
  %v2896 = vrot.slane %v2645, 5
  %v2897 = vrot.slane %v2648, 4
  %v2898 = vsel %vm2724, %v2897, %v2896
  %v2899 = vrot.slane %v2653, 3
  %v2900 = vsel %vm2727, %v2899, %v2898
  %v2901 = vrot.slane %v2656, 2
  %v2902 = vsel %vm2730, %v2901, %v2900
  %v2903 = vrot.slane %v2661, 1
  %v2904 = vsel %vm2733, %v2903, %v2902
  %v2905 = vsel %vm2736, %v2664, %v2904
  %v2906 = vrot.slane %v2669, 7
  %v2907 = vsel %vm2739, %v2906, %v2905
  %v2908 = vrot.slane %v2672, 6
  %v2909 = vsel %vm2742, %v2908, %v2907
  %v2910 = vrot.slane %v2677, 5
  %v2911 = vrot.slane %v2680, 4
  %v2912 = vsel %vm2724, %v2911, %v2910
  %v2913 = vrot.slane %v2685, 3
  %v2914 = vsel %vm2727, %v2913, %v2912
  %v2915 = vrot.slane %v2688, 2
  %v2916 = vsel %vm2730, %v2915, %v2914
  %v2917 = vrot.slane %v2693, 1
  %v2918 = vsel %vm2733, %v2917, %v2916
  %v2919 = vsel %vm2736, %v2696, %v2918
  %v2920 = vrot.slane %v2701, 7
  %v2921 = vsel %vm2739, %v2920, %v2919
  %v2922 = vrot.slane %v2704, 6
  %v2923 = vsel %vm2742, %v2922, %v2921
  %2924 = vrot.lane.b32.xlu0 %v2909, 80
  %v2925 = vpop.permute.xlu0 %2924
  %2926 = vrot.lane.b32.xlu0 %v2923, 80
  %v2927 = vpop.permute.xlu0 %2926
  %v2930 = vrot.slane %v2645, 6
  %v2931 = vrot.slane %v2648, 5
  %v2932 = vsel %vm2724, %v2931, %v2930
  %v2933 = vrot.slane %v2653, 4
  %v2934 = vsel %vm2727, %v2933, %v2932
  %v2935 = vrot.slane %v2656, 3
  %v2936 = vsel %vm2730, %v2935, %v2934
  %v2937 = vrot.slane %v2661, 2
  %v2938 = vsel %vm2733, %v2937, %v2936
  %v2939 = vrot.slane %v2664, 1
  %v2940 = vsel %vm2736, %v2939, %v2938
  %v2941 = vsel %vm2739, %v2669, %v2940
  %v2942 = vrot.slane %v2672, 7
  %v2943 = vsel %vm2742, %v2942, %v2941
  %v2944 = vrot.slane %v2677, 6
  %v2945 = vrot.slane %v2680, 5
  %v2946 = vsel %vm2724, %v2945, %v2944
  %v2947 = vrot.slane %v2685, 4
  %v2948 = vsel %vm2727, %v2947, %v2946
  %v2949 = vrot.slane %v2688, 3
  %v2950 = vsel %vm2730, %v2949, %v2948
  %v2951 = vrot.slane %v2693, 2
  %v2952 = vsel %vm2733, %v2951, %v2950
  %v2953 = vrot.slane %v2696, 1
  %v2954 = vsel %vm2736, %v2953, %v2952
  %v2955 = vsel %vm2739, %v2701, %v2954
  %v2956 = vrot.slane %v2704, 7
  %v2957 = vsel %vm2742, %v2956, %v2955
  %2958 = vrot.lane.b32.xlu0 %v2943, 96
  %v2959 = vpop.permute.xlu0 %2958
  %2960 = vrot.lane.b32.xlu0 %v2957, 96
  %v2961 = vpop.permute.xlu0 %2960
  %v2964 = vrot.slane %v2645, 7
  %v2965 = vrot.slane %v2648, 6
  %v2966 = vsel %vm2724, %v2965, %v2964
  %v2967 = vrot.slane %v2653, 5
  %v2968 = vsel %vm2727, %v2967, %v2966
  %v2969 = vrot.slane %v2656, 4
  %v2970 = vsel %vm2730, %v2969, %v2968
  %v2971 = vrot.slane %v2661, 3
  %v2972 = vsel %vm2733, %v2971, %v2970
  %v2973 = vrot.slane %v2664, 2
  %v2974 = vsel %vm2736, %v2973, %v2972
  %v2975 = vrot.slane %v2669, 1
  %v2976 = vsel %vm2739, %v2975, %v2974
  %v2977 = vsel %vm2742, %v2672, %v2976
  %v2978 = vrot.slane %v2677, 7
  %v2979 = vrot.slane %v2680, 6
  %v2980 = vsel %vm2724, %v2979, %v2978
  %v2981 = vrot.slane %v2685, 5
  %v2982 = vsel %vm2727, %v2981, %v2980
  %v2983 = vrot.slane %v2688, 4
  %v2984 = vsel %vm2730, %v2983, %v2982
  %v2985 = vrot.slane %v2693, 3
  %v2986 = vsel %vm2733, %v2985, %v2984
  %v2987 = vrot.slane %v2696, 2
  %v2988 = vsel %vm2736, %v2987, %v2986
  %v2989 = vrot.slane %v2701, 1
  %v2990 = vsel %vm2739, %v2989, %v2988
  %v2991 = vsel %vm2742, %v2704, %v2990
  %2992 = vrot.lane.b32.xlu0 %v2977, 112
  %v2993 = vpop.permute.xlu0 %2992
  %2994 = vrot.lane.b32.xlu0 %v2991, 112
  %v2995 = vpop.permute.xlu0 %2994
  %v2998 = vsel %vm920, %v2743, %v2789
  %v2999 = vsel %vm920, %v2757, %v2791
  %v3000 = vsel %vm988, %v2998, %v2823
  %v3001 = vsel %vm988, %v2999, %v2825
  %v3002 = vsel %vm2151, %v3000, %v2857
  %v3003 = vsel %vm2151, %v3001, %v2859
  %v3004 = vsel %vm2185, %v3002, %v2891
  %v3005 = vsel %vm2185, %v3003, %v2893
  %vm3006 = vcmask 654336
  %v3007 = vsel %vm3006, %v3004, %v2925
  %v3008 = vsel %vm3006, %v3005, %v2927
  %vm3009 = vcmask 785408
  %v3010 = vsel %vm3009, %v3007, %v2959
  %v3011 = vsel %vm3009, %v3008, %v2961
  %vm3012 = vcmask 916480
  %v3013 = vsel %vm3012, %v3010, %v2993
  %v3014 = vsel %vm3012, %v3011, %v2995
  %3015 = vst [vmem:[%s11] sm:$0xff] %v3013
  %3016 = vst [vmem:[%s11 + $0x8] sm:$0xff] %v3014
  // Predicated region
  $region46: #{center2d_forward.1} parent=0 // pred_check
    _
  $region47: #{center2d_forward.1} parent=0 // pred_check_branch
    %3018 = sbr.rel (0) target = $region49
  $region48: #{center2d_forward.1} parent=0 // pred_region
    _
  $region49: #{center2d_forward.1} parent=0 // pred_fallthru
    _
  // Predicated region
  $region50: #{center2d_forward.1} parent=0 // pred_check
    _
  $region51: #{center2d_forward.1} parent=0 // pred_check_branch
    %3020 = sbr.rel (0) target = $region53
  $region52: #{center2d_forward.1} parent=0 // pred_region
    _
  $region53: #{center2d_forward.1} parent=0 // pred_fallthru
    _

</llo_original>
